<compile_context>
chip_gen: v5e
topology: v5e:2x2
jax: 0.10.0
libtpu: 0.0.40
codegen_flags: <defaults>
</compile_context>

<pallas_src>
import functools

import jax
import jax.numpy as jnp
from jax.experimental import pallas as pl
from jax.experimental.pallas import tpu as pltpu

BN_EPS = 1e-5      # nn.BatchNorm1d default eps
POE_EPS = 1e-8     # product_of_experts eps
RES_EXPANSION = 2.0


# ---------------------------------------------------------------------------
# In-kernel building blocks
# ---------------------------------------------------------------------------
def _bn_train(h, gamma, beta):
    """BatchNorm1d, training mode (biased batch variance), folded to a single
    scale/shift pass: y = h*scale + (beta - mean*scale)."""
    mean = jnp.mean(h, axis=0, keepdims=True)
    var = jnp.mean(h * h, axis=0, keepdims=True) - mean * mean
    var = jnp.maximum(var, 0.0)                       # guard fp cancellation
    scale = gamma * jax.lax.rsqrt(var + BN_EPS)
    return h * scale + (beta - mean * scale)


def _projector(x, w1, g1, b1, w2, g2, b2):
    """Projector: Linear -> BN(train) -> ReLU -> Linear -> BN(train).
    Linear biases omitted (exactly cancelled by the BN mean subtraction)."""
    h = jnp.dot(x, w1, preferred_element_type=jnp.float32)
    h = jnp.maximum(_bn_train(h, g1, b1), 0.0)
    y = jnp.dot(h, w2, preferred_element_type=jnp.float32)
    return _bn_train(y, g2, b2)


# ---------------------------------------------------------------------------
# Single fused Pallas kernel: entire MUSE_Projector.forward
# ---------------------------------------------------------------------------
def muse_kernel(M, Z, *refs):
    """refs = (x_0..x_{M-1}, eps[M+1,B,Z],
               enc_0 params (w1,g1,b1,w2,g2,b2), ..., enc_{M-1} params,
               poe params (6), dec params (6),
               out[B, M*Z])"""
    xs = refs[:M]
    eps_ref = refs[M]                                  # [M+1, B, Z]
    p = M + 1
    enc = [refs[p + 6 * i: p + 6 * (i + 1)] for i in range(M)]
    p += 6 * M
    pw1, pg1, pb1, pw2, pg2, pb2 = refs[p:p + 6]
    p += 6
    dw1, dg1, db1, dw2, dg2, db2 = refs[p:p + 6]
    p += 6
    out_ref = refs[p]

    # ---- Stage 1: per-modality VAE encoders + reparameterise ---------------
    # Packed weights (mu and logvar Projectors share x_i):
    #   w1: [Cin, 2H] = [mu.W1 | logvar.W1]; w2: [2H, 2Z] = blockdiag.
    zs = []
    for i in range(M):
        w1, g1, b1, w2, g2, b2 = enc[i]
        y = _projector(xs[i][...], w1[...], g1[...], b1[...],
                       w2[...], g2[...], b2[...])      # [B, 2Z] = [mu | logvar]
        zs.append(y[:, :Z] + eps_ref[i] * jnp.exp(0.5 * y[:, Z:]))

    # ---- Stage 2: poe mu/logvar encoders, all modalities in one packed pass -
    # pw1 is block-diagonal across modalities ([M*Z, M*4Z]); row-slice i only
    # feeds modality-i columns, so summing the slice matmuls gives the packed h.
    h = jnp.dot(zs[0], pw1[0:Z, :], preferred_element_type=jnp.float32)
    for i in range(1, M):
        h = h + jnp.dot(zs[i], pw1[i * Z:(i + 1) * Z, :],
                        preferred_element_type=jnp.float32)
    h = jnp.maximum(_bn_train(h, pg1[...], pb1[...]), 0.0)
    y = jnp.dot(h, pw2[...], preferred_element_type=jnp.float32)   # [B, M*2Z]
    y = _bn_train(y, pg2[...], pb2[...])               # layout [mu_0|lv_0|mu_1|lv_1|...]

    # ---- Stage 3: product of experts (prior expert mu=0, logvar=0 folded in) -
    B = eps_ref.shape[1]
    sum_T = jnp.full((B, Z), 1.0 / (1.0 + POE_EPS), jnp.float32)
    num = jnp.zeros((B, Z), jnp.float32)
    for i in range(M):
        mu_i = y[:, i * 2 * Z: i * 2 * Z + Z]
        logvar_i = y[:, i * 2 * Z + Z: (i + 1) * 2 * Z]
        T_i = 1.0 / (jnp.exp(logvar_i) + POE_EPS)
        sum_T = sum_T + T_i
        num = num + mu_i * T_i
    # pd_logvar = log(1/sum_T)  =>  exp(pd_logvar/2) == rsqrt(sum_T)
    z = num / sum_T + eps_ref[M] * jax.lax.rsqrt(sum_T)

    # ---- Stage 4: decoders (shared z; W1 concatenated, W2 block-diagonal) ---
    recon = _projector(z, dw1[...], dg1[...], db1[...],
                       dw2[...], dg2[...], db2[...])   # [B, M*Z] lane-packed
    out_ref[...] = recon.astype(out_ref.dtype)


# ---------------------------------------------------------------------------
# Pallas wrapper
# ---------------------------------------------------------------------------
def _fs(shape):
    """Whole-array-as-one-block BlockSpec (grid=(1,))."""
    zeros = (0,) * len(shape)
    return pl.BlockSpec(tuple(shape), lambda i, _z=zeros: _z)


_PARAM_ORDER = ("w1", "g1", "be1", "w2", "g2", "be2")


def muse_forward_pallas(xs, eps_all, params):
    """xs: list of [B, C_i]; eps_all: [M+1, B, Z] -> list of [B, Z] recon_zs."""
    M = len(xs)
    B = xs[0].shape[0]
    Z = params["dec"]["w1"].shape[0]
    enc_args = [params["enc"][i][k] for i in range(M) for k in _PARAM_ORDER]
    poe_args = [params["poe"][k] for k in _PARAM_ORDER]
    dec_args = [params["dec"][k] for k in _PARAM_ORDER]
    operands = list(xs) + [eps_all] + enc_args + poe_args + dec_args

    recon_cat = pl.pallas_call(
        functools.partial(muse_kernel, M, Z),
        grid=(1,),
        in_specs=[_fs(a.shape) for a in operands],
        out_specs=_fs((B, M * Z)),
        out_shape=jax.ShapeDtypeStruct((B, M * Z), jnp.float32),
        compiler_params=pltpu.CompilerParams(dimension_semantics=("arbitrary",)),
    )(*operands)
    return [recon_cat[:, i * Z:(i + 1) * Z] for i in range(M)]


@jax.jit
def muse_forward(xs, eps_all, params):
    return muse_forward_pallas(xs, eps_all, params)


# ---------------------------------------------------------------------------
# Packed parameter construction (mirrors MUSE_Projector.__init__, 'eye' init)
# ---------------------------------------------------------------------------
def _block_diag(blocks):
    rows = sum(b.shape[0] for b in blocks)
    cols = sum(b.shape[1] for b in blocks)
    out = jnp.zeros((rows, cols), jnp.float32)
    r = c = 0
    for b in blocks:
        out = out.at[r:r + b.shape[0], c:c + b.shape[1]].set(b)
        r += b.shape[0]
        c += b.shape[1]
    return out


def _bn_params(width):
    return (jnp.ones((1, width), jnp.float32), jnp.zeros((1, width), jnp.float32))


def make_muse_params(x_channels, z_channels, res_expansion=RES_EXPANSION):
    """Linear weights stored [in, out] (PyTorch weight.T); eye_ init gives
    rectangular identities. Linear biases dropped (dead under train-mode BN).
    BatchNorm: gamma=1, beta=0."""
    Z = z_channels
    M = len(x_channels)
    Hp = int(Z * res_expansion)

    params = {"enc": []}
    for ch in x_channels:
        H = int(ch * res_expansion)
        g1, be1 = _bn_params(2 * H)
        g2, be2 = _bn_params(2 * Z)
        params["enc"].append({
            "w1": jnp.concatenate([jnp.eye(ch, H, dtype=jnp.float32),
                                   jnp.eye(ch, H, dtype=jnp.float32)], axis=1),
            "g1": g1, "be1": be1,
            "w2": _block_diag([jnp.eye(H, Z, dtype=jnp.float32),
                               jnp.eye(H, Z, dtype=jnp.float32)]),
            "g2": g2, "be2": be2,
        })

    # PoE mu/logvar encoders (Z -> Z, hidden Hp), block-diagonal across modalities.
    poe_w1 = _block_diag([
        jnp.concatenate([jnp.eye(Z, Hp, dtype=jnp.float32),
                         jnp.eye(Z, Hp, dtype=jnp.float32)], axis=1)
        for _ in range(M)])                                        # [M*Z, M*2Hp]
    poe_w2 = _block_diag([
        _block_diag([jnp.eye(Hp, Z, dtype=jnp.float32),
                     jnp.eye(Hp, Z, dtype=jnp.float32)])
        for _ in range(M)])                                        # [M*2Hp, M*2Z]
    g1, be1 = _bn_params(M * 2 * Hp)
    g2, be2 = _bn_params(M * 2 * Z)
    params["poe"] = {"w1": poe_w1, "g1": g1, "be1": be1,
                     "w2": poe_w2, "g2": g2, "be2": be2}

    # Decoders (Z -> Z, hidden Hp), shared input z: W1 concatenated, W2 block-diag.
    dec_w1 = jnp.concatenate([jnp.eye(Z, Hp, dtype=jnp.float32)
                              for _ in range(M)], axis=1)          # [Z, M*Hp]
    dec_w2 = _block_diag([jnp.eye(Hp, Z, dtype=jnp.float32)
                          for _ in range(M)])                      # [M*Hp, M*Z]
    g1, be1 = _bn_params(M * Hp)
    g2, be2 = _bn_params(M * Z)
    params["dec"] = {"w1": dec_w1, "g1": g1, "be1": be1,
                     "w2": dec_w2, "g2": g2, "be2": be2}
    return params


# ---------------------------------------------------------------------------
# Pure-JAX reference (same packed params, same eps) for a correctness check
# ---------------------------------------------------------------------------
def _bn_ref(h, gamma, beta):
    mean = jnp.mean(h, axis=0, keepdims=True)
    var = jnp.mean((h - mean) ** 2, axis=0, keepdims=True)
    return (h - mean) * jax.lax.rsqrt(var + BN_EPS) * gamma + beta


def _proj_ref(x, p):
    hp = jax.lax.Precision.HIGHEST
    h = jnp.maximum(_bn_ref(jnp.dot(x, p["w1"], precision=hp), p["g1"], p["be1"]), 0.0)
    return _bn_ref(jnp.dot(h, p["w2"], precision=hp), p["g2"], p["be2"])


def muse_forward_ref(xs, eps_all, params):
    M = len(xs)
    Z = params["dec"]["w1"].shape[0]
    B = xs[0].shape[0]
    zs = []
    for i, x in enumerate(xs):
        y = _proj_ref(x, params["enc"][i])
        zs.append(y[:, :Z] + eps_all[i] * jnp.exp(0.5 * y[:, Z:]))
    y = _proj_ref(jnp.concatenate(zs, axis=1), params["poe"])
    mus = [jnp.zeros((B, Z), jnp.float32)]        # prior expert mu=0
    lvs = [jnp.zeros((B, Z), jnp.float32)]        # prior expert logvar=0
    for i in range(M):
        mus.append(y[:, i * 2 * Z: i * 2 * Z + Z])
        lvs.append(y[:, i * 2 * Z + Z: (i + 1) * 2 * Z])
    T = 1.0 / (jnp.exp(jnp.stack(lvs)) + POE_EPS)
    pd_mu = jnp.sum(jnp.stack(mus) * T, axis=0) / jnp.sum(T, axis=0)
    pd_var = 1.0 / jnp.sum(T, axis=0)
    z = pd_mu + eps_all[M] * jnp.exp(0.5 * jnp.log(pd_var))
    recon = _proj_ref(z, params["dec"])
    return [recon[:, i * Z:(i + 1) * Z] for i in range(M)]


# ---------------------------------------------------------------------------
if __name__ == "__main__":
    key = jax.random.PRNGKey(0)

    B = 8
    x_channels = [16, 32]
    z_channels = 32
    M = len(x_channels)

    params = make_muse_params(x_channels, z_channels, RES_EXPANSION)

    key, kx0, kx1, kn = jax.random.split(key, 4)
    xs = [
        jax.random.normal(kx0, (B, x_channels[0]), jnp.float32),
        jax.random.normal(kx1, (B, x_channels[1]), jnp.float32),
    ]
    # One RNG draw per reparameterisation (M per-modality + 1 PoE).
    eps_all = jax.random.normal(kn, (M + 1, B, z_channels), jnp.float32)

    recon_zs = muse_forward(xs, eps_all, params)
    recon_zs = jax.block_until_ready(recon_zs)

    ref_zs = muse_forward_ref(xs, eps_all, params)

    assert len(recon_zs) == M
    for r, ref in zip(recon_zs, ref_zs):
        assert r.shape == (B, z_channels)
        assert bool(jnp.all(jnp.isfinite(r)))
        assert bool(jnp.allclose(r, ref, rtol=1e-2, atol=1e-2)), "mismatch vs JAX reference"

    print("KERNEL_OK")
</pallas_src>

<mosaic_0001>
module attributes {stable_mosaic.version = 11 : i64} {
  func.func @muse_kernel(%arg0: i32, %arg1: memref<8x16xf32, #tpu.memory_space<vmem>>, %arg2: memref<8x32xf32, #tpu.memory_space<vmem>>, %arg3: memref<3x8x32xf32, #tpu.memory_space<vmem>>, %arg4: memref<16x64xf32, #tpu.memory_space<vmem>>, %arg5: memref<1x64xf32, #tpu.memory_space<vmem>>, %arg6: memref<1x64xf32, #tpu.memory_space<vmem>>, %arg7: memref<64x64xf32, #tpu.memory_space<vmem>>, %arg8: memref<1x64xf32, #tpu.memory_space<vmem>>, %arg9: memref<1x64xf32, #tpu.memory_space<vmem>>, %arg10: memref<32x128xf32, #tpu.memory_space<vmem>>, %arg11: memref<1x128xf32, #tpu.memory_space<vmem>>, %arg12: memref<1x128xf32, #tpu.memory_space<vmem>>, %arg13: memref<128x64xf32, #tpu.memory_space<vmem>>, %arg14: memref<1x64xf32, #tpu.memory_space<vmem>>, %arg15: memref<1x64xf32, #tpu.memory_space<vmem>>, %arg16: memref<64x256xf32, #tpu.memory_space<vmem>>, %arg17: memref<1x256xf32, #tpu.memory_space<vmem>>, %arg18: memref<1x256xf32, #tpu.memory_space<vmem>>, %arg19: memref<256x128xf32, #tpu.memory_space<vmem>>, %arg20: memref<1x128xf32, #tpu.memory_space<vmem>>, %arg21: memref<1x128xf32, #tpu.memory_space<vmem>>, %arg22: memref<32x128xf32, #tpu.memory_space<vmem>>, %arg23: memref<1x128xf32, #tpu.memory_space<vmem>>, %arg24: memref<1x128xf32, #tpu.memory_space<vmem>>, %arg25: memref<128x64xf32, #tpu.memory_space<vmem>>, %arg26: memref<1x64xf32, #tpu.memory_space<vmem>>, %arg27: memref<1x64xf32, #tpu.memory_space<vmem>>, %arg28: memref<8x64xf32, #tpu.memory_space<vmem>>) attributes {dimension_semantics = [#tpu.dimension_semantics<arbitrary>], iteration_bounds = array<i64: 1>, scalar_prefetch = 0 : i64, scratch_operands = 0 : i64, tpu.core_type = #tpu.core_type<tc>, window_params = [{pipeline_mode = #tpu.pipeline_mode<synchronous>, transform_indices = @transform_0, window_bounds = array<i64: 8, 16>}, {pipeline_mode = #tpu.pipeline_mode<synchronous>, transform_indices = @transform_1, window_bounds = array<i64: 8, 32>}, {pipeline_mode = #tpu.pipeline_mode<synchronous>, transform_indices = @transform_2, window_bounds = array<i64: 3, 8, 32>}, {pipeline_mode = #tpu.pipeline_mode<synchronous>, transform_indices = @transform_3, window_bounds = array<i64: 16, 64>}, {pipeline_mode = #tpu.pipeline_mode<synchronous>, transform_indices = @transform_4, window_bounds = array<i64: 1, 64>}, {pipeline_mode = #tpu.pipeline_mode<synchronous>, transform_indices = @transform_5, window_bounds = array<i64: 1, 64>}, {pipeline_mode = #tpu.pipeline_mode<synchronous>, transform_indices = @transform_6, window_bounds = array<i64: 64, 64>}, {pipeline_mode = #tpu.pipeline_mode<synchronous>, transform_indices = @transform_7, window_bounds = array<i64: 1, 64>}, {pipeline_mode = #tpu.pipeline_mode<synchronous>, transform_indices = @transform_8, window_bounds = array<i64: 1, 64>}, {pipeline_mode = #tpu.pipeline_mode<synchronous>, transform_indices = @transform_9, window_bounds = array<i64: 32, 128>}, {pipeline_mode = #tpu.pipeline_mode<synchronous>, transform_indices = @transform_10, window_bounds = array<i64: 1, 128>}, {pipeline_mode = #tpu.pipeline_mode<synchronous>, transform_indices = @transform_11, window_bounds = array<i64: 1, 128>}, {pipeline_mode = #tpu.pipeline_mode<synchronous>, transform_indices = @transform_12, window_bounds = array<i64: 128, 64>}, {pipeline_mode = #tpu.pipeline_mode<synchronous>, transform_indices = @transform_13, window_bounds = array<i64: 1, 64>}, {pipeline_mode = #tpu.pipeline_mode<synchronous>, transform_indices = @transform_14, window_bounds = array<i64: 1, 64>}, {pipeline_mode = #tpu.pipeline_mode<synchronous>, transform_indices = @transform_15, window_bounds = array<i64: 64, 256>}, {pipeline_mode = #tpu.pipeline_mode<synchronous>, transform_indices = @transform_16, window_bounds = array<i64: 1, 256>}, {pipeline_mode = #tpu.pipeline_mode<synchronous>, transform_indices = @transform_17, window_bounds = array<i64: 1, 256>}, {pipeline_mode = #tpu.pipeline_mode<synchronous>, transform_indices = @transform_18, window_bounds = array<i64: 256, 128>}, {pipeline_mode = #tpu.pipeline_mode<synchronous>, transform_indices = @transform_19, window_bounds = array<i64: 1, 128>}, {pipeline_mode = #tpu.pipeline_mode<synchronous>, transform_indices = @transform_20, window_bounds = array<i64: 1, 128>}, {pipeline_mode = #tpu.pipeline_mode<synchronous>, transform_indices = @transform_21, window_bounds = array<i64: 32, 128>}, {pipeline_mode = #tpu.pipeline_mode<synchronous>, transform_indices = @transform_22, window_bounds = array<i64: 1, 128>}, {pipeline_mode = #tpu.pipeline_mode<synchronous>, transform_indices = @transform_23, window_bounds = array<i64: 1, 128>}, {pipeline_mode = #tpu.pipeline_mode<synchronous>, transform_indices = @transform_24, window_bounds = array<i64: 128, 64>}, {pipeline_mode = #tpu.pipeline_mode<synchronous>, transform_indices = @transform_25, window_bounds = array<i64: 1, 64>}, {pipeline_mode = #tpu.pipeline_mode<synchronous>, transform_indices = @transform_26, window_bounds = array<i64: 1, 64>}, {pipeline_mode = #tpu.pipeline_mode<synchronous>, transform_indices = @transform_27, window_bounds = array<i64: 8, 64>}]} {
    %c0 = arith.constant 0 : index
    %c0_0 = arith.constant 0 : index
    %0 = vector.load %arg1[%c0, %c0_0] : memref<8x16xf32, #tpu.memory_space<vmem>>, vector<8x16xf32>
    %c0_1 = arith.constant 0 : index
    %c0_2 = arith.constant 0 : index
    %1 = vector.load %arg4[%c0_1, %c0_2] : memref<16x64xf32, #tpu.memory_space<vmem>>, vector<16x64xf32>
    %c0_3 = arith.constant 0 : index
    %c0_4 = arith.constant 0 : index
    %2 = vector.load %arg5[%c0_3, %c0_4] : memref<1x64xf32, #tpu.memory_space<vmem>>, vector<1x64xf32>
    %c0_5 = arith.constant 0 : index
    %c0_6 = arith.constant 0 : index
    %3 = vector.load %arg6[%c0_5, %c0_6] : memref<1x64xf32, #tpu.memory_space<vmem>>, vector<1x64xf32>
    %c0_7 = arith.constant 0 : index
    %c0_8 = arith.constant 0 : index
    %4 = vector.load %arg7[%c0_7, %c0_8] : memref<64x64xf32, #tpu.memory_space<vmem>>, vector<64x64xf32>
    %c0_9 = arith.constant 0 : index
    %c0_10 = arith.constant 0 : index
    %5 = vector.load %arg8[%c0_9, %c0_10] : memref<1x64xf32, #tpu.memory_space<vmem>>, vector<1x64xf32>
    %c0_11 = arith.constant 0 : index
    %c0_12 = arith.constant 0 : index
    %6 = vector.load %arg9[%c0_11, %c0_12] : memref<1x64xf32, #tpu.memory_space<vmem>>, vector<1x64xf32>
    %cst = arith.constant dense<0.000000e+00> : vector<8x64xf32>
    %7 = tpu.matmul %0, %1, %cst {dimension_numbers = #tpu.dot_dimension_numbers<[1], [0], [0], [1], [0, 0, 1, 1], [], []>} : vector<8x16xf32>, vector<16x64xf32>, vector<8x64xf32> -> vector<8x64xf32>
    %cst_13 = arith.constant dense<0.000000e+00> : vector<64xf32>
    %8 = vector.multi_reduction <add>, %7, %cst_13 [0] : vector<8x64xf32> to vector<64xf32>
    %9 = vector.shape_cast %8 : vector<64xf32> to vector<1x64xf32>
    %cst_14 = arith.constant 8.000000e+00 : f32
    %10 = vector.broadcast %cst_14 : f32 to vector<1x64xf32>
    %11 = arith.divf %9, %10 : vector<1x64xf32>
    %12 = arith.mulf %7, %7 : vector<8x64xf32>
    %cst_15 = arith.constant dense<0.000000e+00> : vector<64xf32>
    %13 = vector.multi_reduction <add>, %12, %cst_15 [0] : vector<8x64xf32> to vector<64xf32>
    %14 = vector.shape_cast %13 : vector<64xf32> to vector<1x64xf32>
    %cst_16 = arith.constant 8.000000e+00 : f32
    %15 = vector.broadcast %cst_16 : f32 to vector<1x64xf32>
    %16 = arith.divf %14, %15 : vector<1x64xf32>
    %17 = arith.mulf %11, %11 : vector<1x64xf32>
    %18 = arith.subf %16, %17 : vector<1x64xf32>
    %cst_17 = arith.constant 0.000000e+00 : f32
    %19 = vector.broadcast %cst_17 : f32 to vector<1x64xf32>
    %20 = arith.maximumf %18, %19 : vector<1x64xf32>
    %cst_18 = arith.constant 9.99999974E-6 : f32
    %21 = vector.broadcast %cst_18 : f32 to vector<1x64xf32>
    %22 = arith.addf %20, %21 : vector<1x64xf32>
    %23 = math.rsqrt %22 : vector<1x64xf32>
    %24 = arith.mulf %2, %23 : vector<1x64xf32>
    %25 = vector.broadcast %24 : vector<1x64xf32> to vector<8x64xf32>
    %26 = arith.mulf %7, %25 : vector<8x64xf32>
    %27 = arith.mulf %11, %24 : vector<1x64xf32>
    %28 = arith.subf %3, %27 : vector<1x64xf32>
    %29 = vector.broadcast %28 : vector<1x64xf32> to vector<8x64xf32>
    %30 = arith.addf %26, %29 : vector<8x64xf32>
    %cst_19 = arith.constant 0.000000e+00 : f32
    %31 = vector.broadcast %cst_19 : f32 to vector<8x64xf32>
    %32 = arith.maximumf %30, %31 : vector<8x64xf32>
    %cst_20 = arith.constant dense<0.000000e+00> : vector<8x64xf32>
    %33 = tpu.matmul %32, %4, %cst_20 {dimension_numbers = #tpu.dot_dimension_numbers<[1], [0], [0], [1], [0, 0, 1, 1], [], []>} : vector<8x64xf32>, vector<64x64xf32>, vector<8x64xf32> -> vector<8x64xf32>
    %cst_21 = arith.constant dense<0.000000e+00> : vector<64xf32>
    %34 = vector.multi_reduction <add>, %33, %cst_21 [0] : vector<8x64xf32> to vector<64xf32>
    %35 = vector.shape_cast %34 : vector<64xf32> to vector<1x64xf32>
    %cst_22 = arith.constant 8.000000e+00 : f32
    %36 = vector.broadcast %cst_22 : f32 to vector<1x64xf32>
    %37 = arith.divf %35, %36 : vector<1x64xf32>
    %38 = arith.mulf %33, %33 : vector<8x64xf32>
    %cst_23 = arith.constant dense<0.000000e+00> : vector<64xf32>
    %39 = vector.multi_reduction <add>, %38, %cst_23 [0] : vector<8x64xf32> to vector<64xf32>
    %40 = vector.shape_cast %39 : vector<64xf32> to vector<1x64xf32>
    %cst_24 = arith.constant 8.000000e+00 : f32
    %41 = vector.broadcast %cst_24 : f32 to vector<1x64xf32>
    %42 = arith.divf %40, %41 : vector<1x64xf32>
    %43 = arith.mulf %37, %37 : vector<1x64xf32>
    %44 = arith.subf %42, %43 : vector<1x64xf32>
    %cst_25 = arith.constant 0.000000e+00 : f32
    %45 = vector.broadcast %cst_25 : f32 to vector<1x64xf32>
    %46 = arith.maximumf %44, %45 : vector<1x64xf32>
    %cst_26 = arith.constant 9.99999974E-6 : f32
    %47 = vector.broadcast %cst_26 : f32 to vector<1x64xf32>
    %48 = arith.addf %46, %47 : vector<1x64xf32>
    %49 = math.rsqrt %48 : vector<1x64xf32>
    %50 = arith.mulf %5, %49 : vector<1x64xf32>
    %51 = vector.broadcast %50 : vector<1x64xf32> to vector<8x64xf32>
    %52 = arith.mulf %33, %51 : vector<8x64xf32>
    %53 = arith.mulf %37, %50 : vector<1x64xf32>
    %54 = arith.subf %6, %53 : vector<1x64xf32>
    %55 = vector.broadcast %54 : vector<1x64xf32> to vector<8x64xf32>
    %56 = arith.addf %52, %55 : vector<8x64xf32>
    %57 = vector.extract_strided_slice %56 {offsets = [0, 0], sizes = [8, 32], strides = [1, 1]} : vector<8x64xf32> to vector<8x32xf32>
    %c0_27 = arith.constant 0 : index
    %c0_28 = arith.constant 0 : index
    %c0_29 = arith.constant 0 : index
    %58 = vector.load %arg3[%c0_27, %c0_28, %c0_29] : memref<3x8x32xf32, #tpu.memory_space<vmem>>, vector<1x8x32xf32>
    %59 = vector.shape_cast %58 : vector<1x8x32xf32> to vector<8x32xf32>
    %60 = vector.extract_strided_slice %56 {offsets = [0, 32], sizes = [8, 32], strides = [1, 1]} : vector<8x64xf32> to vector<8x32xf32>
    %cst_30 = arith.constant 5.000000e-01 : f32
    %61 = vector.broadcast %cst_30 : f32 to vector<8x32xf32>
    %62 = arith.mulf %61, %60 : vector<8x32xf32>
    %63 = math.exp %62 : vector<8x32xf32>
    %64 = arith.mulf %59, %63 : vector<8x32xf32>
    %65 = arith.addf %57, %64 : vector<8x32xf32>
    %c0_31 = arith.constant 0 : index
    %c0_32 = arith.constant 0 : index
    %66 = vector.load %arg2[%c0_31, %c0_32] : memref<8x32xf32, #tpu.memory_space<vmem>>, vector<8x32xf32>
    %c0_33 = arith.constant 0 : index
    %c0_34 = arith.constant 0 : index
    %67 = vector.load %arg10[%c0_33, %c0_34] : memref<32x128xf32, #tpu.memory_space<vmem>>, vector<32x128xf32>
    %c0_35 = arith.constant 0 : index
    %c0_36 = arith.constant 0 : index
    %68 = vector.load %arg11[%c0_35, %c0_36] : memref<1x128xf32, #tpu.memory_space<vmem>>, vector<1x128xf32>
    %c0_37 = arith.constant 0 : index
    %c0_38 = arith.constant 0 : index
    %69 = vector.load %arg12[%c0_37, %c0_38] : memref<1x128xf32, #tpu.memory_space<vmem>>, vector<1x128xf32>
    %c0_39 = arith.constant 0 : index
    %c0_40 = arith.constant 0 : index
    %70 = vector.load %arg13[%c0_39, %c0_40] : memref<128x64xf32, #tpu.memory_space<vmem>>, vector<128x64xf32>
    %c0_41 = arith.constant 0 : index
    %c0_42 = arith.constant 0 : index
    %71 = vector.load %arg14[%c0_41, %c0_42] : memref<1x64xf32, #tpu.memory_space<vmem>>, vector<1x64xf32>
    %c0_43 = arith.constant 0 : index
    %c0_44 = arith.constant 0 : index
    %72 = vector.load %arg15[%c0_43, %c0_44] : memref<1x64xf32, #tpu.memory_space<vmem>>, vector<1x64xf32>
    %cst_45 = arith.constant dense<0.000000e+00> : vector<8x128xf32>
    %73 = tpu.matmul %66, %67, %cst_45 {dimension_numbers = #tpu.dot_dimension_numbers<[1], [0], [0], [1], [0, 0, 1, 1], [], []>} : vector<8x32xf32>, vector<32x128xf32>, vector<8x128xf32> -> vector<8x128xf32>
    %cst_46 = arith.constant dense<0.000000e+00> : vector<128xf32>
    %74 = vector.multi_reduction <add>, %73, %cst_46 [0] : vector<8x128xf32> to vector<128xf32>
    %75 = vector.shape_cast %74 : vector<128xf32> to vector<1x128xf32>
    %cst_47 = arith.constant 8.000000e+00 : f32
    %76 = vector.broadcast %cst_47 : f32 to vector<1x128xf32>
    %77 = arith.divf %75, %76 : vector<1x128xf32>
    %78 = arith.mulf %73, %73 : vector<8x128xf32>
    %cst_48 = arith.constant dense<0.000000e+00> : vector<128xf32>
    %79 = vector.multi_reduction <add>, %78, %cst_48 [0] : vector<8x128xf32> to vector<128xf32>
    %80 = vector.shape_cast %79 : vector<128xf32> to vector<1x128xf32>
    %cst_49 = arith.constant 8.000000e+00 : f32
    %81 = vector.broadcast %cst_49 : f32 to vector<1x128xf32>
    %82 = arith.divf %80, %81 : vector<1x128xf32>
    %83 = arith.mulf %77, %77 : vector<1x128xf32>
    %84 = arith.subf %82, %83 : vector<1x128xf32>
    %cst_50 = arith.constant 0.000000e+00 : f32
    %85 = vector.broadcast %cst_50 : f32 to vector<1x128xf32>
    %86 = arith.maximumf %84, %85 : vector<1x128xf32>
    %cst_51 = arith.constant 9.99999974E-6 : f32
    %87 = vector.broadcast %cst_51 : f32 to vector<1x128xf32>
    %88 = arith.addf %86, %87 : vector<1x128xf32>
    %89 = math.rsqrt %88 : vector<1x128xf32>
    %90 = arith.mulf %68, %89 : vector<1x128xf32>
    %91 = vector.broadcast %90 : vector<1x128xf32> to vector<8x128xf32>
    %92 = arith.mulf %73, %91 : vector<8x128xf32>
    %93 = arith.mulf %77, %90 : vector<1x128xf32>
    %94 = arith.subf %69, %93 : vector<1x128xf32>
    %95 = vector.broadcast %94 : vector<1x128xf32> to vector<8x128xf32>
    %96 = arith.addf %92, %95 : vector<8x128xf32>
    %cst_52 = arith.constant 0.000000e+00 : f32
    %97 = vector.broadcast %cst_52 : f32 to vector<8x128xf32>
    %98 = arith.maximumf %96, %97 : vector<8x128xf32>
    %cst_53 = arith.constant dense<0.000000e+00> : vector<8x64xf32>
    %99 = tpu.matmul %98, %70, %cst_53 {dimension_numbers = #tpu.dot_dimension_numbers<[1], [0], [0], [1], [0, 0, 1, 1], [], []>} : vector<8x128xf32>, vector<128x64xf32>, vector<8x64xf32> -> vector<8x64xf32>
    %cst_54 = arith.constant dense<0.000000e+00> : vector<64xf32>
    %100 = vector.multi_reduction <add>, %99, %cst_54 [0] : vector<8x64xf32> to vector<64xf32>
    %101 = vector.shape_cast %100 : vector<64xf32> to vector<1x64xf32>
    %cst_55 = arith.constant 8.000000e+00 : f32
    %102 = vector.broadcast %cst_55 : f32 to vector<1x64xf32>
    %103 = arith.divf %101, %102 : vector<1x64xf32>
    %104 = arith.mulf %99, %99 : vector<8x64xf32>
    %cst_56 = arith.constant dense<0.000000e+00> : vector<64xf32>
    %105 = vector.multi_reduction <add>, %104, %cst_56 [0] : vector<8x64xf32> to vector<64xf32>
    %106 = vector.shape_cast %105 : vector<64xf32> to vector<1x64xf32>
    %cst_57 = arith.constant 8.000000e+00 : f32
    %107 = vector.broadcast %cst_57 : f32 to vector<1x64xf32>
    %108 = arith.divf %106, %107 : vector<1x64xf32>
    %109 = arith.mulf %103, %103 : vector<1x64xf32>
    %110 = arith.subf %108, %109 : vector<1x64xf32>
    %cst_58 = arith.constant 0.000000e+00 : f32
    %111 = vector.broadcast %cst_58 : f32 to vector<1x64xf32>
    %112 = arith.maximumf %110, %111 : vector<1x64xf32>
    %cst_59 = arith.constant 9.99999974E-6 : f32
    %113 = vector.broadcast %cst_59 : f32 to vector<1x64xf32>
    %114 = arith.addf %112, %113 : vector<1x64xf32>
    %115 = math.rsqrt %114 : vector<1x64xf32>
    %116 = arith.mulf %71, %115 : vector<1x64xf32>
    %117 = vector.broadcast %116 : vector<1x64xf32> to vector<8x64xf32>
    %118 = arith.mulf %99, %117 : vector<8x64xf32>
    %119 = arith.mulf %103, %116 : vector<1x64xf32>
    %120 = arith.subf %72, %119 : vector<1x64xf32>
    %121 = vector.broadcast %120 : vector<1x64xf32> to vector<8x64xf32>
    %122 = arith.addf %118, %121 : vector<8x64xf32>
    %123 = vector.extract_strided_slice %122 {offsets = [0, 0], sizes = [8, 32], strides = [1, 1]} : vector<8x64xf32> to vector<8x32xf32>
    %c1 = arith.constant 1 : index
    %c0_60 = arith.constant 0 : index
    %c0_61 = arith.constant 0 : index
    %124 = vector.load %arg3[%c1, %c0_60, %c0_61] : memref<3x8x32xf32, #tpu.memory_space<vmem>>, vector<1x8x32xf32>
    %125 = vector.shape_cast %124 : vector<1x8x32xf32> to vector<8x32xf32>
    %126 = vector.extract_strided_slice %122 {offsets = [0, 32], sizes = [8, 32], strides = [1, 1]} : vector<8x64xf32> to vector<8x32xf32>
    %cst_62 = arith.constant 5.000000e-01 : f32
    %127 = vector.broadcast %cst_62 : f32 to vector<8x32xf32>
    %128 = arith.mulf %127, %126 : vector<8x32xf32>
    %129 = math.exp %128 : vector<8x32xf32>
    %130 = arith.mulf %125, %129 : vector<8x32xf32>
    %131 = arith.addf %123, %130 : vector<8x32xf32>
    %c0_63 = arith.constant 0 : index
    %c0_64 = arith.constant 0 : index
    %132 = vector.load %arg16[%c0_63, %c0_64] : memref<64x256xf32, #tpu.memory_space<vmem>>, vector<32x256xf32>
    %cst_65 = arith.constant dense<0.000000e+00> : vector<8x256xf32>
    %133 = tpu.matmul %65, %132, %cst_65 {dimension_numbers = #tpu.dot_dimension_numbers<[1], [0], [0], [1], [0, 0, 1, 1], [], []>} : vector<8x32xf32>, vector<32x256xf32>, vector<8x256xf32> -> vector<8x256xf32>
    %c32 = arith.constant 32 : index
    %c0_66 = arith.constant 0 : index
    %134 = vector.load %arg16[%c32, %c0_66] : memref<64x256xf32, #tpu.memory_space<vmem>>, vector<32x256xf32>
    %cst_67 = arith.constant dense<0.000000e+00> : vector<8x256xf32>
    %135 = tpu.matmul %131, %134, %cst_67 {dimension_numbers = #tpu.dot_dimension_numbers<[1], [0], [0], [1], [0, 0, 1, 1], [], []>} : vector<8x32xf32>, vector<32x256xf32>, vector<8x256xf32> -> vector<8x256xf32>
    %136 = arith.addf %133, %135 : vector<8x256xf32>
    %c0_68 = arith.constant 0 : index
    %c0_69 = arith.constant 0 : index
    %137 = vector.load %arg17[%c0_68, %c0_69] : memref<1x256xf32, #tpu.memory_space<vmem>>, vector<1x256xf32>
    %c0_70 = arith.constant 0 : index
    %c0_71 = arith.constant 0 : index
    %138 = vector.load %arg18[%c0_70, %c0_71] : memref<1x256xf32, #tpu.memory_space<vmem>>, vector<1x256xf32>
    %cst_72 = arith.constant dense<0.000000e+00> : vector<256xf32>
    %139 = vector.multi_reduction <add>, %136, %cst_72 [0] : vector<8x256xf32> to vector<256xf32>
    %140 = vector.shape_cast %139 : vector<256xf32> to vector<1x256xf32>
    %cst_73 = arith.constant 8.000000e+00 : f32
    %141 = vector.broadcast %cst_73 : f32 to vector<1x256xf32>
    %142 = arith.divf %140, %141 : vector<1x256xf32>
    %143 = arith.mulf %136, %136 : vector<8x256xf32>
    %cst_74 = arith.constant dense<0.000000e+00> : vector<256xf32>
    %144 = vector.multi_reduction <add>, %143, %cst_74 [0] : vector<8x256xf32> to vector<256xf32>
    %145 = vector.shape_cast %144 : vector<256xf32> to vector<1x256xf32>
    %cst_75 = arith.constant 8.000000e+00 : f32
    %146 = vector.broadcast %cst_75 : f32 to vector<1x256xf32>
    %147 = arith.divf %145, %146 : vector<1x256xf32>
    %148 = arith.mulf %142, %142 : vector<1x256xf32>
    %149 = arith.subf %147, %148 : vector<1x256xf32>
    %cst_76 = arith.constant 0.000000e+00 : f32
    %150 = vector.broadcast %cst_76 : f32 to vector<1x256xf32>
    %151 = arith.maximumf %149, %150 : vector<1x256xf32>
    %cst_77 = arith.constant 9.99999974E-6 : f32
    %152 = vector.broadcast %cst_77 : f32 to vector<1x256xf32>
    %153 = arith.addf %151, %152 : vector<1x256xf32>
    %154 = math.rsqrt %153 : vector<1x256xf32>
    %155 = arith.mulf %137, %154 : vector<1x256xf32>
    %156 = vector.broadcast %155 : vector<1x256xf32> to vector<8x256xf32>
    %157 = arith.mulf %136, %156 : vector<8x256xf32>
    %158 = arith.mulf %142, %155 : vector<1x256xf32>
    %159 = arith.subf %138, %158 : vector<1x256xf32>
    %160 = vector.broadcast %159 : vector<1x256xf32> to vector<8x256xf32>
    %161 = arith.addf %157, %160 : vector<8x256xf32>
    %cst_78 = arith.constant 0.000000e+00 : f32
    %162 = vector.broadcast %cst_78 : f32 to vector<8x256xf32>
    %163 = arith.maximumf %161, %162 : vector<8x256xf32>
    %c0_79 = arith.constant 0 : index
    %c0_80 = arith.constant 0 : index
    %164 = vector.load %arg19[%c0_79, %c0_80] : memref<256x128xf32, #tpu.memory_space<vmem>>, vector<256x128xf32>
    %cst_81 = arith.constant dense<0.000000e+00> : vector<8x128xf32>
    %165 = tpu.matmul %163, %164, %cst_81 {dimension_numbers = #tpu.dot_dimension_numbers<[1], [0], [0], [1], [0, 0, 1, 1], [], []>} : vector<8x256xf32>, vector<256x128xf32>, vector<8x128xf32> -> vector<8x128xf32>
    %c0_82 = arith.constant 0 : index
    %c0_83 = arith.constant 0 : index
    %166 = vector.load %arg20[%c0_82, %c0_83] : memref<1x128xf32, #tpu.memory_space<vmem>>, vector<1x128xf32>
    %c0_84 = arith.constant 0 : index
    %c0_85 = arith.constant 0 : index
    %167 = vector.load %arg21[%c0_84, %c0_85] : memref<1x128xf32, #tpu.memory_space<vmem>>, vector<1x128xf32>
    %cst_86 = arith.constant dense<0.000000e+00> : vector<128xf32>
    %168 = vector.multi_reduction <add>, %165, %cst_86 [0] : vector<8x128xf32> to vector<128xf32>
    %169 = vector.shape_cast %168 : vector<128xf32> to vector<1x128xf32>
    %cst_87 = arith.constant 8.000000e+00 : f32
    %170 = vector.broadcast %cst_87 : f32 to vector<1x128xf32>
    %171 = arith.divf %169, %170 : vector<1x128xf32>
    %172 = arith.mulf %165, %165 : vector<8x128xf32>
    %cst_88 = arith.constant dense<0.000000e+00> : vector<128xf32>
    %173 = vector.multi_reduction <add>, %172, %cst_88 [0] : vector<8x128xf32> to vector<128xf32>
    %174 = vector.shape_cast %173 : vector<128xf32> to vector<1x128xf32>
    %cst_89 = arith.constant 8.000000e+00 : f32
    %175 = vector.broadcast %cst_89 : f32 to vector<1x128xf32>
    %176 = arith.divf %174, %175 : vector<1x128xf32>
    %177 = arith.mulf %171, %171 : vector<1x128xf32>
    %178 = arith.subf %176, %177 : vector<1x128xf32>
    %cst_90 = arith.constant 0.000000e+00 : f32
    %179 = vector.broadcast %cst_90 : f32 to vector<1x128xf32>
    %180 = arith.maximumf %178, %179 : vector<1x128xf32>
    %cst_91 = arith.constant 9.99999974E-6 : f32
    %181 = vector.broadcast %cst_91 : f32 to vector<1x128xf32>
    %182 = arith.addf %180, %181 : vector<1x128xf32>
    %183 = math.rsqrt %182 : vector<1x128xf32>
    %184 = arith.mulf %166, %183 : vector<1x128xf32>
    %185 = vector.broadcast %184 : vector<1x128xf32> to vector<8x128xf32>
    %186 = arith.mulf %165, %185 : vector<8x128xf32>
    %187 = arith.mulf %171, %184 : vector<1x128xf32>
    %188 = arith.subf %167, %187 : vector<1x128xf32>
    %189 = vector.broadcast %188 : vector<1x128xf32> to vector<8x128xf32>
    %190 = arith.addf %186, %189 : vector<8x128xf32>
    %cst_92 = arith.constant 1.000000e+00 : f32
    %191 = vector.broadcast %cst_92 : f32 to vector<8x32xf32>
    %cst_93 = arith.constant 0.000000e+00 : f32
    %192 = vector.broadcast %cst_93 : f32 to vector<8x32xf32>
    %193 = vector.extract_strided_slice %190 {offsets = [0, 0], sizes = [8, 32], strides = [1, 1]} : vector<8x128xf32> to vector<8x32xf32>
    %194 = vector.extract_strided_slice %190 {offsets = [0, 32], sizes = [8, 32], strides = [1, 1]} : vector<8x128xf32> to vector<8x32xf32>
    %195 = math.exp %194 : vector<8x32xf32>
    %cst_94 = arith.constant 9.99999993E-9 : f32
    %196 = vector.broadcast %cst_94 : f32 to vector<8x32xf32>
    %197 = arith.addf %195, %196 : vector<8x32xf32>
    %cst_95 = arith.constant 1.000000e+00 : f32
    %198 = vector.broadcast %cst_95 : f32 to vector<8x32xf32>
    %199 = arith.divf %198, %197 : vector<8x32xf32>
    %200 = arith.addf %191, %199 : vector<8x32xf32>
    %201 = arith.mulf %193, %199 : vector<8x32xf32>
    %202 = arith.addf %192, %201 : vector<8x32xf32>
    %203 = vector.extract_strided_slice %190 {offsets = [0, 64], sizes = [8, 32], strides = [1, 1]} : vector<8x128xf32> to vector<8x32xf32>
    %204 = vector.extract_strided_slice %190 {offsets = [0, 96], sizes = [8, 32], strides = [1, 1]} : vector<8x128xf32> to vector<8x32xf32>
    %205 = math.exp %204 : vector<8x32xf32>
    %cst_96 = arith.constant 9.99999993E-9 : f32
    %206 = vector.broadcast %cst_96 : f32 to vector<8x32xf32>
    %207 = arith.addf %205, %206 : vector<8x32xf32>
    %cst_97 = arith.constant 1.000000e+00 : f32
    %208 = vector.broadcast %cst_97 : f32 to vector<8x32xf32>
    %209 = arith.divf %208, %207 : vector<8x32xf32>
    %210 = arith.addf %200, %209 : vector<8x32xf32>
    %211 = arith.mulf %203, %209 : vector<8x32xf32>
    %212 = arith.addf %202, %211 : vector<8x32xf32>
    %213 = arith.divf %212, %210 : vector<8x32xf32>
    %c2 = arith.constant 2 : index
    %c0_98 = arith.constant 0 : index
    %c0_99 = arith.constant 0 : index
    %214 = vector.load %arg3[%c2, %c0_98, %c0_99] : memref<3x8x32xf32, #tpu.memory_space<vmem>>, vector<1x8x32xf32>
    %215 = vector.shape_cast %214 : vector<1x8x32xf32> to vector<8x32xf32>
    %216 = math.rsqrt %210 : vector<8x32xf32>
    %217 = arith.mulf %215, %216 : vector<8x32xf32>
    %218 = arith.addf %213, %217 : vector<8x32xf32>
    %c0_100 = arith.constant 0 : index
    %c0_101 = arith.constant 0 : index
    %219 = vector.load %arg22[%c0_100, %c0_101] : memref<32x128xf32, #tpu.memory_space<vmem>>, vector<32x128xf32>
    %c0_102 = arith.constant 0 : index
    %c0_103 = arith.constant 0 : index
    %220 = vector.load %arg23[%c0_102, %c0_103] : memref<1x128xf32, #tpu.memory_space<vmem>>, vector<1x128xf32>
    %c0_104 = arith.constant 0 : index
    %c0_105 = arith.constant 0 : index
    %221 = vector.load %arg24[%c0_104, %c0_105] : memref<1x128xf32, #tpu.memory_space<vmem>>, vector<1x128xf32>
    %c0_106 = arith.constant 0 : index
    %c0_107 = arith.constant 0 : index
    %222 = vector.load %arg25[%c0_106, %c0_107] : memref<128x64xf32, #tpu.memory_space<vmem>>, vector<128x64xf32>
    %c0_108 = arith.constant 0 : index
    %c0_109 = arith.constant 0 : index
    %223 = vector.load %arg26[%c0_108, %c0_109] : memref<1x64xf32, #tpu.memory_space<vmem>>, vector<1x64xf32>
    %c0_110 = arith.constant 0 : index
    %c0_111 = arith.constant 0 : index
    %224 = vector.load %arg27[%c0_110, %c0_111] : memref<1x64xf32, #tpu.memory_space<vmem>>, vector<1x64xf32>
    %cst_112 = arith.constant dense<0.000000e+00> : vector<8x128xf32>
    %225 = tpu.matmul %218, %219, %cst_112 {dimension_numbers = #tpu.dot_dimension_numbers<[1], [0], [0], [1], [0, 0, 1, 1], [], []>} : vector<8x32xf32>, vector<32x128xf32>, vector<8x128xf32> -> vector<8x128xf32>
    %cst_113 = arith.constant dense<0.000000e+00> : vector<128xf32>
    %226 = vector.multi_reduction <add>, %225, %cst_113 [0] : vector<8x128xf32> to vector<128xf32>
    %227 = vector.shape_cast %226 : vector<128xf32> to vector<1x128xf32>
    %cst_114 = arith.constant 8.000000e+00 : f32
    %228 = vector.broadcast %cst_114 : f32 to vector<1x128xf32>
    %229 = arith.divf %227, %228 : vector<1x128xf32>
    %230 = arith.mulf %225, %225 : vector<8x128xf32>
    %cst_115 = arith.constant dense<0.000000e+00> : vector<128xf32>
    %231 = vector.multi_reduction <add>, %230, %cst_115 [0] : vector<8x128xf32> to vector<128xf32>
    %232 = vector.shape_cast %231 : vector<128xf32> to vector<1x128xf32>
    %cst_116 = arith.constant 8.000000e+00 : f32
    %233 = vector.broadcast %cst_116 : f32 to vector<1x128xf32>
    %234 = arith.divf %232, %233 : vector<1x128xf32>
    %235 = arith.mulf %229, %229 : vector<1x128xf32>
    %236 = arith.subf %234, %235 : vector<1x128xf32>
    %cst_117 = arith.constant 0.000000e+00 : f32
    %237 = vector.broadcast %cst_117 : f32 to vector<1x128xf32>
    %238 = arith.maximumf %236, %237 : vector<1x128xf32>
    %cst_118 = arith.constant 9.99999974E-6 : f32
    %239 = vector.broadcast %cst_118 : f32 to vector<1x128xf32>
    %240 = arith.addf %238, %239 : vector<1x128xf32>
    %241 = math.rsqrt %240 : vector<1x128xf32>
    %242 = arith.mulf %220, %241 : vector<1x128xf32>
    %243 = vector.broadcast %242 : vector<1x128xf32> to vector<8x128xf32>
    %244 = arith.mulf %225, %243 : vector<8x128xf32>
    %245 = arith.mulf %229, %242 : vector<1x128xf32>
    %246 = arith.subf %221, %245 : vector<1x128xf32>
    %247 = vector.broadcast %246 : vector<1x128xf32> to vector<8x128xf32>
    %248 = arith.addf %244, %247 : vector<8x128xf32>
    %cst_119 = arith.constant 0.000000e+00 : f32
    %249 = vector.broadcast %cst_119 : f32 to vector<8x128xf32>
    %250 = arith.maximumf %248, %249 : vector<8x128xf32>
    %cst_120 = arith.constant dense<0.000000e+00> : vector<8x64xf32>
    %251 = tpu.matmul %250, %222, %cst_120 {dimension_numbers = #tpu.dot_dimension_numbers<[1], [0], [0], [1], [0, 0, 1, 1], [], []>} : vector<8x128xf32>, vector<128x64xf32>, vector<8x64xf32> -> vector<8x64xf32>
    %cst_121 = arith.constant dense<0.000000e+00> : vector<64xf32>
    %252 = vector.multi_reduction <add>, %251, %cst_121 [0] : vector<8x64xf32> to vector<64xf32>
    %253 = vector.shape_cast %252 : vector<64xf32> to vector<1x64xf32>
    %cst_122 = arith.constant 8.000000e+00 : f32
    %254 = vector.broadcast %cst_122 : f32 to vector<1x64xf32>
    %255 = arith.divf %253, %254 : vector<1x64xf32>
    %256 = arith.mulf %251, %251 : vector<8x64xf32>
    %cst_123 = arith.constant dense<0.000000e+00> : vector<64xf32>
    %257 = vector.multi_reduction <add>, %256, %cst_123 [0] : vector<8x64xf32> to vector<64xf32>
    %258 = vector.shape_cast %257 : vector<64xf32> to vector<1x64xf32>
    %cst_124 = arith.constant 8.000000e+00 : f32
    %259 = vector.broadcast %cst_124 : f32 to vector<1x64xf32>
    %260 = arith.divf %258, %259 : vector<1x64xf32>
    %261 = arith.mulf %255, %255 : vector<1x64xf32>
    %262 = arith.subf %260, %261 : vector<1x64xf32>
    %cst_125 = arith.constant 0.000000e+00 : f32
    %263 = vector.broadcast %cst_125 : f32 to vector<1x64xf32>
    %264 = arith.maximumf %262, %263 : vector<1x64xf32>
    %cst_126 = arith.constant 9.99999974E-6 : f32
    %265 = vector.broadcast %cst_126 : f32 to vector<1x64xf32>
    %266 = arith.addf %264, %265 : vector<1x64xf32>
    %267 = math.rsqrt %266 : vector<1x64xf32>
    %268 = arith.mulf %223, %267 : vector<1x64xf32>
    %269 = vector.broadcast %268 : vector<1x64xf32> to vector<8x64xf32>
    %270 = arith.mulf %251, %269 : vector<8x64xf32>
    %271 = arith.mulf %255, %268 : vector<1x64xf32>
    %272 = arith.subf %224, %271 : vector<1x64xf32>
    %273 = vector.broadcast %272 : vector<1x64xf32> to vector<8x64xf32>
    %274 = arith.addf %270, %273 : vector<8x64xf32>
    %c0_127 = arith.constant 0 : index
    %c0_128 = arith.constant 0 : index
    %275 = vector.load %arg28[%c0_127, %c0_128] : memref<8x64xf32, #tpu.memory_space<vmem>>, vector<8x64xf32>
    tpu.vector_store %arg28[%c0_127, %c0_128], %274 {strides = array<i32>} : memref<8x64xf32, #tpu.memory_space<vmem>>, vector<8x64xf32>,
    return
  }
  func.func @transform_0(%arg0: i32) -> (i32, i32) {
    %c0_i32 = arith.constant 0 : i32
    %c0_i32_0 = arith.constant 0 : i32
    %c0_i32_1 = arith.constant 0 : i32
    return %c0_i32, %c0_i32_0 : i32, i32
  }
  func.func @transform_1(%arg0: i32) -> (i32, i32) {
    %c0_i32 = arith.constant 0 : i32
    %c0_i32_0 = arith.constant 0 : i32
    %c0_i32_1 = arith.constant 0 : i32
    return %c0_i32, %c0_i32_0 : i32, i32
  }
  func.func @transform_2(%arg0: i32) -> (i32, i32, i32) {
    %c0_i32 = arith.constant 0 : i32
    %c0_i32_0 = arith.constant 0 : i32
    %c0_i32_1 = arith.constant 0 : i32
    %c0_i32_2 = arith.constant 0 : i32
    return %c0_i32, %c0_i32_0, %c0_i32_1 : i32, i32, i32
  }
  func.func @transform_3(%arg0: i32) -> (i32, i32) {
    %c0_i32 = arith.constant 0 : i32
    %c0_i32_0 = arith.constant 0 : i32
    %c0_i32_1 = arith.constant 0 : i32
    return %c0_i32, %c0_i32_0 : i32, i32
  }
  func.func @transform_4(%arg0: i32) -> (i32, i32) {
    %c0_i32 = arith.constant 0 : i32
    %c0_i32_0 = arith.constant 0 : i32
    %c0_i32_1 = arith.constant 0 : i32
    return %c0_i32, %c0_i32_0 : i32, i32
  }
  func.func @transform_5(%arg0: i32) -> (i32, i32) {
    %c0_i32 = arith.constant 0 : i32
    %c0_i32_0 = arith.constant 0 : i32
    %c0_i32_1 = arith.constant 0 : i32
    return %c0_i32, %c0_i32_0 : i32, i32
  }
  func.func @transform_6(%arg0: i32) -> (i32, i32) {
    %c0_i32 = arith.constant 0 : i32
    %c0_i32_0 = arith.constant 0 : i32
    %c0_i32_1 = arith.constant 0 : i32
    return %c0_i32, %c0_i32_0 : i32, i32
  }
  func.func @transform_7(%arg0: i32) -> (i32, i32) {
    %c0_i32 = arith.constant 0 : i32
    %c0_i32_0 = arith.constant 0 : i32
    %c0_i32_1 = arith.constant 0 : i32
    return %c0_i32, %c0_i32_0 : i32, i32
  }
  func.func @transform_8(%arg0: i32) -> (i32, i32) {
    %c0_i32 = arith.constant 0 : i32
    %c0_i32_0 = arith.constant 0 : i32
    %c0_i32_1 = arith.constant 0 : i32
    return %c0_i32, %c0_i32_0 : i32, i32
  }
  func.func @transform_9(%arg0: i32) -> (i32, i32) {
    %c0_i32 = arith.constant 0 : i32
    %c0_i32_0 = arith.constant 0 : i32
    %c0_i32_1 = arith.constant 0 : i32
    return %c0_i32, %c0_i32_0 : i32, i32
  }
  func.func @transform_10(%arg0: i32) -> (i32, i32) {
    %c0_i32 = arith.constant 0 : i32
    %c0_i32_0 = arith.constant 0 : i32
    %c0_i32_1 = arith.constant 0 : i32
    return %c0_i32, %c0_i32_0 : i32, i32
  }
  func.func @transform_11(%arg0: i32) -> (i32, i32) {
    %c0_i32 = arith.constant 0 : i32
    %c0_i32_0 = arith.constant 0 : i32
    %c0_i32_1 = arith.constant 0 : i32
    return %c0_i32, %c0_i32_0 : i32, i32
  }
  func.func @transform_12(%arg0: i32) -> (i32, i32) {
    %c0_i32 = arith.constant 0 : i32
    %c0_i32_0 = arith.constant 0 : i32
    %c0_i32_1 = arith.constant 0 : i32
    return %c0_i32, %c0_i32_0 : i32, i32
  }
  func.func @transform_13(%arg0: i32) -> (i32, i32) {
    %c0_i32 = arith.constant 0 : i32
    %c0_i32_0 = arith.constant 0 : i32
    %c0_i32_1 = arith.constant 0 : i32
    return %c0_i32, %c0_i32_0 : i32, i32
  }
  func.func @transform_14(%arg0: i32) -> (i32, i32) {
    %c0_i32 = arith.constant 0 : i32
    %c0_i32_0 = arith.constant 0 : i32
    %c0_i32_1 = arith.constant 0 : i32
    return %c0_i32, %c0_i32_0 : i32, i32
  }
  func.func @transform_15(%arg0: i32) -> (i32, i32) {
    %c0_i32 = arith.constant 0 : i32
    %c0_i32_0 = arith.constant 0 : i32
    %c0_i32_1 = arith.constant 0 : i32
    return %c0_i32, %c0_i32_0 : i32, i32
  }
  func.func @transform_16(%arg0: i32) -> (i32, i32) {
    %c0_i32 = arith.constant 0 : i32
    %c0_i32_0 = arith.constant 0 : i32
    %c0_i32_1 = arith.constant 0 : i32
    return %c0_i32, %c0_i32_0 : i32, i32
  }
  func.func @transform_17(%arg0: i32) -> (i32, i32) {
    %c0_i32 = arith.constant 0 : i32
    %c0_i32_0 = arith.constant 0 : i32
    %c0_i32_1 = arith.constant 0 : i32
    return %c0_i32, %c0_i32_0 : i32, i32
  }
  func.func @transform_18(%arg0: i32) -> (i32, i32) {
    %c0_i32 = arith.constant 0 : i32
    %c0_i32_0 = arith.constant 0 : i32
    %c0_i32_1 = arith.constant 0 : i32
    return %c0_i32, %c0_i32_0 : i32, i32
  }
  func.func @transform_19(%arg0: i32) -> (i32, i32) {
    %c0_i32 = arith.constant 0 : i32
    %c0_i32_0 = arith.constant 0 : i32
    %c0_i32_1 = arith.constant 0 : i32
    return %c0_i32, %c0_i32_0 : i32, i32
  }
  func.func @transform_20(%arg0: i32) -> (i32, i32) {
    %c0_i32 = arith.constant 0 : i32
    %c0_i32_0 = arith.constant 0 : i32
    %c0_i32_1 = arith.constant 0 : i32
    return %c0_i32, %c0_i32_0 : i32, i32
  }
  func.func @transform_21(%arg0: i32) -> (i32, i32) {
    %c0_i32 = arith.constant 0 : i32
    %c0_i32_0 = arith.constant 0 : i32
    %c0_i32_1 = arith.constant 0 : i32
    return %c0_i32, %c0_i32_0 : i32, i32
  }
  func.func @transform_22(%arg0: i32) -> (i32, i32) {
    %c0_i32 = arith.constant 0 : i32
    %c0_i32_0 = arith.constant 0 : i32
    %c0_i32_1 = arith.constant 0 : i32
    return %c0_i32, %c0_i32_0 : i32, i32
  }
  func.func @transform_23(%arg0: i32) -> (i32, i32) {
    %c0_i32 = arith.constant 0 : i32
    %c0_i32_0 = arith.constant 0 : i32
    %c0_i32_1 = arith.constant 0 : i32
    return %c0_i32, %c0_i32_0 : i32, i32
  }
  func.func @transform_24(%arg0: i32) -> (i32, i32) {
    %c0_i32 = arith.constant 0 : i32
    %c0_i32_0 = arith.constant 0 : i32
    %c0_i32_1 = arith.constant 0 : i32
    return %c0_i32, %c0_i32_0 : i32, i32
  }
  func.func @transform_25(%arg0: i32) -> (i32, i32) {
    %c0_i32 = arith.constant 0 : i32
    %c0_i32_0 = arith.constant 0 : i32
    %c0_i32_1 = arith.constant 0 : i32
    return %c0_i32, %c0_i32_0 : i32, i32
  }
  func.func @transform_26(%arg0: i32) -> (i32, i32) {
    %c0_i32 = arith.constant 0 : i32
    %c0_i32_0 = arith.constant 0 : i32
    %c0_i32_1 = arith.constant 0 : i32
    return %c0_i32, %c0_i32_0 : i32, i32
  }
  func.func @transform_27(%arg0: i32) -> (i32, i32) {
    %c0_i32 = arith.constant 0 : i32
    %c0_i32_0 = arith.constant 0 : i32
    %c0_i32_1 = arith.constant 0 : i32
    return %c0_i32, %c0_i32_0 : i32, i32
  }
}

</mosaic_0001>

<llo_original>
// kernel: muse_forward.1
$region0: #{muse_forward.1}
  #allocation0 [shape = 'u32[]', space=smem, size = 0x4, offset = 0x4, fixed_abs, tag = 'smem constant byte address 0x4 - core index']
  #allocation1 [shape = 'u32[72,128]{1,0:T(1,128)}', space=vmem, size = 0x9000, scoped, tag = 'internal scratch']
  %s0 = inlined_call_operand.hbm [shape: f32[8,16], index: 0, kind: input, shape index: {}]
  %s1 = inlined_call_operand.hbm [shape: f32[8,32], index: 1, kind: input, shape index: {}]
  %s2 = inlined_call_operand.hbm [shape: f32[3,8,32], index: 2, kind: input, shape index: {}]
  %s3 = inlined_call_operand.hbm [shape: f32[16,64], index: 3, kind: input, shape index: {}]
  %s4 = inlined_call_operand.vmem [shape: f32[1,64], index: 4, kind: input, shape index: {}]
  %s5 = inlined_call_operand.hbm [shape: f32[1,64], index: 5, kind: input, shape index: {}]
  %s6 = inlined_call_operand.vmem [shape: f32[64,64], index: 6, kind: input, shape index: {}]
  %s7 = inlined_call_operand.vmem [shape: f32[1,64], index: 7, kind: input, shape index: {}]
  %s8 = inlined_call_operand.vmem [shape: f32[1,64], index: 8, kind: input, shape index: {}]
  %s9 = inlined_call_operand.hbm [shape: f32[32,128], index: 9, kind: input, shape index: {}]
  %s10 = inlined_call_operand.vmem [shape: f32[1,128], index: 10, kind: input, shape index: {}]
  %s11 = inlined_call_operand.vmem [shape: f32[1,128], index: 11, kind: input, shape index: {}]
  %s12 = inlined_call_operand.vmem [shape: f32[128,64], index: 12, kind: input, shape index: {}]
  %s13 = inlined_call_operand.vmem [shape: f32[1,64], index: 13, kind: input, shape index: {}]
  %s14 = inlined_call_operand.vmem [shape: f32[1,64], index: 14, kind: input, shape index: {}]
  %s15 = inlined_call_operand.hbm [shape: f32[64,256], index: 15, kind: input, shape index: {}]
  %s16 = inlined_call_operand.vmem [shape: f32[1,256], index: 16, kind: input, shape index: {}]
  %s17 = inlined_call_operand.vmem [shape: f32[1,256], index: 17, kind: input, shape index: {}]
  %s18 = inlined_call_operand.vmem [shape: f32[256,128], index: 18, kind: input, shape index: {}]
  %s19 = inlined_call_operand.vmem [shape: f32[1,128], index: 19, kind: input, shape index: {}]
  %s20 = inlined_call_operand.vmem [shape: f32[1,128], index: 20, kind: input, shape index: {}]
  %s21 = inlined_call_operand.hbm [shape: f32[32,128], index: 21, kind: input, shape index: {}]
  %s22 = inlined_call_operand.hbm [shape: f32[1,128], index: 22, kind: input, shape index: {}]
  %s23 = inlined_call_operand.hbm [shape: f32[1,128], index: 23, kind: input, shape index: {}]
  %s24 = inlined_call_operand.vmem [shape: f32[128,64], index: 24, kind: input, shape index: {}]
  %s25 = inlined_call_operand.hbm [shape: f32[1,64], index: 25, kind: input, shape index: {}]
  %s26 = inlined_call_operand.hbm [shape: f32[1,64], index: 26, kind: input, shape index: {}]
  %s27 = inlined_call_operand.vmem [shape: f32[8,64], index: 27, kind: output, shape index: {}]
  %s28 = sld [smem:[#allocation0]]
  $region166: #{muse_forward.1} parent=0
    _
  %s30 = ssub.s32 1, %s28
  %s31 = scalar_select 0, %s30, %s28
  $region1: #{muse_forward.1} parent=0
    #allocation2 [shape = 'u8[4096]{0}', space=vmem, size = 0x1000, scoped, tag = 'input window, operand 0, single buffered']
    #allocation3 [shape = 's32[1]{0}', space=sflag, size = 0x4, scoped, tag = 'scoped memory for muse_forward.1']
    #allocation4 [shape = 'u8[4096]{0}', space=vmem, size = 0x1000, scoped, tag = 'input window, operand 1, single buffered']
    #allocation5 [shape = 's32[1]{0}', space=sflag, size = 0x4, scoped, tag = 'scoped memory for muse_forward.1']
    #allocation6 [shape = 'u8[12288]{0}', space=vmem, size = 0x3000, scoped, tag = 'input window, operand 2, single buffered']
    #allocation7 [shape = 'u8[8192]{0}', space=vmem, size = 0x2000, scoped, tag = 'input window, operand 3, single buffered']
    #allocation8 [shape = 's32[1]{0}', space=sflag, size = 0x4, scoped, tag = 'scoped memory for muse_forward.1']
    #allocation9 [shape = 'u8[512]{0}', space=vmem, size = 0x400, scoped, tag = 'input window, operand 5, single buffered']
    #allocation10 [shape = 'u8[16384]{0}', space=vmem, size = 0x4000, scoped, tag = 'input window, operand 9, single buffered']
    #allocation11 [shape = 's32[1]{0}', space=sflag, size = 0x4, scoped, tag = 'scoped memory for muse_forward.1']
    #allocation12 [shape = 'u8[65536]{0}', space=vmem, size = 0x10000, scoped, tag = 'input window, operand 15, single buffered']
    #allocation13 [shape = 'u8[16384]{0}', space=vmem, size = 0x4000, scoped, tag = 'input window, operand 21, single buffered']
    #allocation14 [shape = 's32[1]{0}', space=sflag, size = 0x4, scoped, tag = 'scoped memory for muse_forward.1']
    #allocation15 [shape = 'u8[512]{0}', space=vmem, size = 0x400, scoped, tag = 'input window, operand 22, single buffered']
    #allocation16 [shape = 'u8[512]{0}', space=vmem, size = 0x400, scoped, tag = 'input window, operand 23, single buffered']
    #allocation17 [shape = 's32[1]{0}', space=sflag, size = 0x4, scoped, tag = 'scoped memory for muse_forward.1']
    #allocation18 [shape = 'u8[512]{0}', space=vmem, size = 0x400, scoped, tag = 'input window, operand 25, single buffered']
    #allocation19 [shape = 'u8[512]{0}', space=vmem, size = 0x400, scoped, tag = 'input window, operand 26, single buffered']
    #allocation20 [shape = 's32[1]{0}', space=sflag, size = 0x4, scoped, tag = 'scoped memory for muse_forward.1']
    %32 = vsyncpa [#allocation3], 0
    %33 = vsyncpa [#allocation5], 0
    %34 = vsyncpa [#allocation8], 0
    %35 = vsyncpa [#allocation11], 0
    %36 = vsyncpa [#allocation14], 0
    %37 = vsyncpa [#allocation17], 0
    %38 = vsyncpa [#allocation20], 0
    // Predicated region
    $region2: #{muse_forward.1} parent=1 // pred_check
      _
    $region3: #{muse_forward.1} parent=1 // pred_check_branch
      %40 = sbr.rel (0) target = $region5
    $region4: #{muse_forward.1} parent=1 // pred_region
      %42 = vsyncadd [#allocation3], 0
      %s44 = sshll.u32 %s0, 4
      %s45 = int_to_ptr.hbm [resolvable:$true] %s44
      %s46 = sshll.u32 [#allocation2], 4
      %s47 = int_to_ptr.vmem [resolvable:$true] %s46
      %49 = dma.hbm_to_vmem [thread:$0]  %s45, 128, %s47, [#allocation3]
    $region5: #{muse_forward.1} parent=1 // pred_fallthru
      _
    // Predicated region
    $region6: #{muse_forward.1} parent=1 // pred_check
      _
    $region7: #{muse_forward.1} parent=1 // pred_check_branch
      %51 = sbr.rel (0) target = $region9
    $region8: #{muse_forward.1} parent=1 // pred_region
      %53 = vsyncadd [#allocation5], 0
      %s55 = sshll.u32 %s1, 4
      %s56 = int_to_ptr.hbm [resolvable:$true] %s55
      %s57 = sshll.u32 [#allocation4], 4
      %s58 = int_to_ptr.vmem [resolvable:$true] %s57
      %60 = dma.hbm_to_vmem [thread:$0]  %s56, 128, %s58, [#allocation5]
    $region9: #{muse_forward.1} parent=1 // pred_fallthru
      _
    // Predicated region
    $region10: #{muse_forward.1} parent=1 // pred_check
      _
    $region11: #{muse_forward.1} parent=1 // pred_check_branch
      %62 = sbr.rel (0) target = $region13
    $region12: #{muse_forward.1} parent=1 // pred_region
      %64 = vsyncadd [#allocation5], 0
      %s65 = sshll.u32 %s2, 4
      %s66 = int_to_ptr.hbm [resolvable:$true] %s65
      %s67 = sshll.u32 [#allocation6], 4
      %s68 = int_to_ptr.vmem [resolvable:$true] %s67
      %73 = dma.hbm_to_vmem [thread:$0]  %s66, 384, %s68, [#allocation5], 128, 128, 8
    $region13: #{muse_forward.1} parent=1 // pred_fallthru
      _
    // Predicated region
    $region14: #{muse_forward.1} parent=1 // pred_check
      _
    $region15: #{muse_forward.1} parent=1 // pred_check_branch
      %75 = sbr.rel (0) target = $region17
    $region16: #{muse_forward.1} parent=1 // pred_region
      %77 = vsyncadd [#allocation8], 0
      %s78 = sshll.u32 %s3, 4
      %s79 = int_to_ptr.hbm [resolvable:$true] %s78
      %s80 = sshll.u32 [#allocation7], 4
      %s81 = int_to_ptr.vmem [resolvable:$true] %s80
      %86 = dma.hbm_to_vmem [thread:$0]  %s79, 256, %s81, [#allocation8], 128, 128, 8
    $region17: #{muse_forward.1} parent=1 // pred_fallthru
      _
    // Predicated region
    $region18: #{muse_forward.1} parent=1 // pred_check
      _
    $region19: #{muse_forward.1} parent=1 // pred_check_branch
      %88 = sbr.rel (0) target = $region21
    $region20: #{muse_forward.1} parent=1 // pred_region
      _
    $region21: #{muse_forward.1} parent=1 // pred_fallthru
      _
    // Predicated region
    $region22: #{muse_forward.1} parent=1 // pred_check
      _
    $region23: #{muse_forward.1} parent=1 // pred_check_branch
      %90 = sbr.rel (0) target = $region25
    $region24: #{muse_forward.1} parent=1 // pred_region
      %92 = vsyncadd [#allocation8], 0
      %s94 = sshll.u32 %s5, 4
      %s95 = int_to_ptr.hbm [resolvable:$true] %s94
      %s96 = sshll.u32 [#allocation9], 4
      %s97 = int_to_ptr.vmem [resolvable:$true] %s96
      %99 = dma.hbm_to_vmem [thread:$0]  %s95, 16, %s97, [#allocation8]
    $region25: #{muse_forward.1} parent=1 // pred_fallthru
      _
    // Predicated region
    $region26: #{muse_forward.1} parent=1 // pred_check
      _
    $region27: #{muse_forward.1} parent=1 // pred_check_branch
      %101 = sbr.rel (0) target = $region29
    $region28: #{muse_forward.1} parent=1 // pred_region
      _
    $region29: #{muse_forward.1} parent=1 // pred_fallthru
      _
    // Predicated region
    $region30: #{muse_forward.1} parent=1 // pred_check
      _
    $region31: #{muse_forward.1} parent=1 // pred_check_branch
      %103 = sbr.rel (0) target = $region33
    $region32: #{muse_forward.1} parent=1 // pred_region
      _
    $region33: #{muse_forward.1} parent=1 // pred_fallthru
      _
    // Predicated region
    $region34: #{muse_forward.1} parent=1 // pred_check
      _
    $region35: #{muse_forward.1} parent=1 // pred_check_branch
      %105 = sbr.rel (0) target = $region37
    $region36: #{muse_forward.1} parent=1 // pred_region
      _
    $region37: #{muse_forward.1} parent=1 // pred_fallthru
      _
    // Predicated region
    $region38: #{muse_forward.1} parent=1 // pred_check
      _
    $region39: #{muse_forward.1} parent=1 // pred_check_branch
      %107 = sbr.rel (0) target = $region41
    $region40: #{muse_forward.1} parent=1 // pred_region
      %109 = vsyncadd [#allocation11], 0
      %s110 = sshll.u32 %s9, 4
      %s111 = int_to_ptr.hbm [resolvable:$true] %s110
      %s112 = sshll.u32 [#allocation10], 4
      %s113 = int_to_ptr.vmem [resolvable:$true] %s112
      %118 = dma.hbm_to_vmem [thread:$0]  %s111, 512, %s113, [#allocation11], 128, 128, 8
    $region41: #{muse_forward.1} parent=1 // pred_fallthru
      _
    // Predicated region
    $region42: #{muse_forward.1} parent=1 // pred_check
      _
    $region43: #{muse_forward.1} parent=1 // pred_check_branch
      %120 = sbr.rel (0) target = $region45
    $region44: #{muse_forward.1} parent=1 // pred_region
      _
    $region45: #{muse_forward.1} parent=1 // pred_fallthru
      _
    // Predicated region
    $region46: #{muse_forward.1} parent=1 // pred_check
      _
    $region47: #{muse_forward.1} parent=1 // pred_check_branch
      %122 = sbr.rel (0) target = $region49
    $region48: #{muse_forward.1} parent=1 // pred_region
      _
    $region49: #{muse_forward.1} parent=1 // pred_fallthru
      _
    // Predicated region
    $region50: #{muse_forward.1} parent=1 // pred_check
      _
    $region51: #{muse_forward.1} parent=1 // pred_check_branch
      %124 = sbr.rel (0) target = $region53
    $region52: #{muse_forward.1} parent=1 // pred_region
      _
    $region53: #{muse_forward.1} parent=1 // pred_fallthru
      _
    // Predicated region
    $region54: #{muse_forward.1} parent=1 // pred_check
      _
    $region55: #{muse_forward.1} parent=1 // pred_check_branch
      %126 = sbr.rel (0) target = $region57
    $region56: #{muse_forward.1} parent=1 // pred_region
      _
    $region57: #{muse_forward.1} parent=1 // pred_fallthru
      _
    // Predicated region
    $region58: #{muse_forward.1} parent=1 // pred_check
      _
    $region59: #{muse_forward.1} parent=1 // pred_check_branch
      %128 = sbr.rel (0) target = $region61
    $region60: #{muse_forward.1} parent=1 // pred_region
      _
    $region61: #{muse_forward.1} parent=1 // pred_fallthru
      _
    // Predicated region
    $region62: #{muse_forward.1} parent=1 // pred_check
      _
    $region63: #{muse_forward.1} parent=1 // pred_check_branch
      %130 = sbr.rel (0) target = $region65
    $region64: #{muse_forward.1} parent=1 // pred_region
      %132 = vsyncadd [#allocation11], 0
      %s133 = sshll.u32 %s15, 4
      %s134 = int_to_ptr.hbm [resolvable:$true] %s133
      %s135 = sshll.u32 [#allocation12], 4
      %s136 = int_to_ptr.vmem [resolvable:$true] %s135
      %141 = dma.hbm_to_vmem [thread:$0]  %s134, 2048, %s136, [#allocation11], 256, 256, 16
    $region65: #{muse_forward.1} parent=1 // pred_fallthru
      _
    // Predicated region
    $region66: #{muse_forward.1} parent=1 // pred_check
      _
    $region67: #{muse_forward.1} parent=1 // pred_check_branch
      %143 = sbr.rel (0) target = $region69
    $region68: #{muse_forward.1} parent=1 // pred_region
      _
    $region69: #{muse_forward.1} parent=1 // pred_fallthru
      _
    // Predicated region
    $region70: #{muse_forward.1} parent=1 // pred_check
      _
    $region71: #{muse_forward.1} parent=1 // pred_check_branch
      %145 = sbr.rel (0) target = $region73
    $region72: #{muse_forward.1} parent=1 // pred_region
      _
    $region73: #{muse_forward.1} parent=1 // pred_fallthru
      _
    // Predicated region
    $region74: #{muse_forward.1} parent=1 // pred_check
      _
    $region75: #{muse_forward.1} parent=1 // pred_check_branch
      %147 = sbr.rel (0) target = $region77
    $region76: #{muse_forward.1} parent=1 // pred_region
      _
    $region77: #{muse_forward.1} parent=1 // pred_fallthru
      _
    // Predicated region
    $region78: #{muse_forward.1} parent=1 // pred_check
      _
    $region79: #{muse_forward.1} parent=1 // pred_check_branch
      %149 = sbr.rel (0) target = $region81
    $region80: #{muse_forward.1} parent=1 // pred_region
      _
    $region81: #{muse_forward.1} parent=1 // pred_fallthru
      _
    // Predicated region
    $region82: #{muse_forward.1} parent=1 // pred_check
      _
    $region83: #{muse_forward.1} parent=1 // pred_check_branch
      %151 = sbr.rel (0) target = $region85
    $region84: #{muse_forward.1} parent=1 // pred_region
      _
    $region85: #{muse_forward.1} parent=1 // pred_fallthru
      _
    // Predicated region
    $region86: #{muse_forward.1} parent=1 // pred_check
      _
    $region87: #{muse_forward.1} parent=1 // pred_check_branch
      %153 = sbr.rel (0) target = $region89
    $region88: #{muse_forward.1} parent=1 // pred_region
      %155 = vsyncadd [#allocation14], 0
      %s156 = sshll.u32 %s21, 4
      %s157 = int_to_ptr.hbm [resolvable:$true] %s156
      %s158 = sshll.u32 [#allocation13], 4
      %s159 = int_to_ptr.vmem [resolvable:$true] %s158
      %164 = dma.hbm_to_vmem [thread:$0]  %s157, 512, %s159, [#allocation14], 128, 128, 8
    $region89: #{muse_forward.1} parent=1 // pred_fallthru
      _
    // Predicated region
    $region90: #{muse_forward.1} parent=1 // pred_check
      _
    $region91: #{muse_forward.1} parent=1 // pred_check_branch
      %166 = sbr.rel (0) target = $region93
    $region92: #{muse_forward.1} parent=1 // pred_region
      %168 = vsyncadd [#allocation14], 0
      %s170 = sshll.u32 %s22, 4
      %s171 = int_to_ptr.hbm [resolvable:$true] %s170
      %s172 = sshll.u32 [#allocation15], 4
      %s173 = int_to_ptr.vmem [resolvable:$true] %s172
      %175 = dma.hbm_to_vmem [thread:$0]  %s171, 16, %s173, [#allocation14]
    $region93: #{muse_forward.1} parent=1 // pred_fallthru
      _
    // Predicated region
    $region94: #{muse_forward.1} parent=1 // pred_check
      _
    $region95: #{muse_forward.1} parent=1 // pred_check_branch
      %177 = sbr.rel (0) target = $region97
    $region96: #{muse_forward.1} parent=1 // pred_region
      %179 = vsyncadd [#allocation17], 0
      %s181 = sshll.u32 %s23, 4
      %s182 = int_to_ptr.hbm [resolvable:$true] %s181
      %s183 = sshll.u32 [#allocation16], 4
      %s184 = int_to_ptr.vmem [resolvable:$true] %s183
      %186 = dma.hbm_to_vmem [thread:$0]  %s182, 16, %s184, [#allocation17]
    $region97: #{muse_forward.1} parent=1 // pred_fallthru
      _
    // Predicated region
    $region98: #{muse_forward.1} parent=1 // pred_check
      _
    $region99: #{muse_forward.1} parent=1 // pred_check_branch
      %188 = sbr.rel (0) target = $region101
    $region100: #{muse_forward.1} parent=1 // pred_region
      _
    $region101: #{muse_forward.1} parent=1 // pred_fallthru
      _
    // Predicated region
    $region102: #{muse_forward.1} parent=1 // pred_check
      _
    $region103: #{muse_forward.1} parent=1 // pred_check_branch
      %190 = sbr.rel (0) target = $region105
    $region104: #{muse_forward.1} parent=1 // pred_region
      %192 = vsyncadd [#allocation17], 0
      %s194 = sshll.u32 %s25, 4
      %s195 = int_to_ptr.hbm [resolvable:$true] %s194
      %s196 = sshll.u32 [#allocation18], 4
      %s197 = int_to_ptr.vmem [resolvable:$true] %s196
      %199 = dma.hbm_to_vmem [thread:$0]  %s195, 16, %s197, [#allocation17]
    $region105: #{muse_forward.1} parent=1 // pred_fallthru
      _
    // Predicated region
    $region106: #{muse_forward.1} parent=1 // pred_check
      _
    $region107: #{muse_forward.1} parent=1 // pred_check_branch
      %201 = sbr.rel (0) target = $region109
    $region108: #{muse_forward.1} parent=1 // pred_region
      %203 = vsyncadd [#allocation20], 0
      %s205 = sshll.u32 %s26, 4
      %s206 = int_to_ptr.hbm [resolvable:$true] %s205
      %s207 = sshll.u32 [#allocation19], 4
      %s208 = int_to_ptr.vmem [resolvable:$true] %s207
      %210 = dma.hbm_to_vmem [thread:$0]  %s206, 16, %s208, [#allocation20]
    $region109: #{muse_forward.1} parent=1 // pred_fallthru
      _
    // Predicated region
    $region110: #{muse_forward.1} parent=1 // pred_check
      _
    $region111: #{muse_forward.1} parent=1 // pred_check_branch
      %212 = sbr.rel (0) target = $region113
    $region112: #{muse_forward.1} parent=1 // pred_region
      %214 = dma.done [#allocation3], 128
    $region113: #{muse_forward.1} parent=1 // pred_fallthru
      _
    // Predicated region
    $region114: #{muse_forward.1} parent=1 // pred_check
      _
    $region115: #{muse_forward.1} parent=1 // pred_check_branch
      %216 = sbr.rel (0) target = $region117
    $region116: #{muse_forward.1} parent=1 // pred_region
      %218 = dma.done [#allocation5], 128
    $region117: #{muse_forward.1} parent=1 // pred_fallthru
      _
    // Predicated region
    $region118: #{muse_forward.1} parent=1 // pred_check
      _
    $region119: #{muse_forward.1} parent=1 // pred_check_branch
      %220 = sbr.rel (0) target = $region121
    $region120: #{muse_forward.1} parent=1 // pred_region
      %222 = dma.done [#allocation5], 384
    $region121: #{muse_forward.1} parent=1 // pred_fallthru
      _
    // Predicated region
    $region122: #{muse_forward.1} parent=1 // pred_check
      _
    $region123: #{muse_forward.1} parent=1 // pred_check_branch
      %224 = sbr.rel (0) target = $region125
    $region124: #{muse_forward.1} parent=1 // pred_region
      %226 = dma.done [#allocation8], 256
    $region125: #{muse_forward.1} parent=1 // pred_fallthru
      _
    // Predicated region
    $region126: #{muse_forward.1} parent=1 // pred_check
      _
    $region127: #{muse_forward.1} parent=1 // pred_check_branch
      %228 = sbr.rel (0) target = $region129
    $region128: #{muse_forward.1} parent=1 // pred_region
      %230 = dma.done [#allocation8], 16
    $region129: #{muse_forward.1} parent=1 // pred_fallthru
      _
    // Predicated region
    $region130: #{muse_forward.1} parent=1 // pred_check
      _
    $region131: #{muse_forward.1} parent=1 // pred_check_branch
      %232 = sbr.rel (0) target = $region133
    $region132: #{muse_forward.1} parent=1 // pred_region
      %234 = dma.done [#allocation11], 512
    $region133: #{muse_forward.1} parent=1 // pred_fallthru
      _
    // Predicated region
    $region134: #{muse_forward.1} parent=1 // pred_check
      _
    $region135: #{muse_forward.1} parent=1 // pred_check_branch
      %236 = sbr.rel (0) target = $region137
    $region136: #{muse_forward.1} parent=1 // pred_region
      %238 = dma.done [#allocation11], 2048
    $region137: #{muse_forward.1} parent=1 // pred_fallthru
      _
    // Predicated region
    $region138: #{muse_forward.1} parent=1 // pred_check
      _
    $region139: #{muse_forward.1} parent=1 // pred_check_branch
      %240 = sbr.rel (0) target = $region141
    $region140: #{muse_forward.1} parent=1 // pred_region
      %242 = dma.done [#allocation14], 512
    $region141: #{muse_forward.1} parent=1 // pred_fallthru
      _
    // Predicated region
    $region142: #{muse_forward.1} parent=1 // pred_check
      _
    $region143: #{muse_forward.1} parent=1 // pred_check_branch
      %244 = sbr.rel (0) target = $region145
    $region144: #{muse_forward.1} parent=1 // pred_region
      %246 = dma.done [#allocation14], 16
    $region145: #{muse_forward.1} parent=1 // pred_fallthru
      _
    // Predicated region
    $region146: #{muse_forward.1} parent=1 // pred_check
      _
    $region147: #{muse_forward.1} parent=1 // pred_check_branch
      %248 = sbr.rel (0) target = $region149
    $region148: #{muse_forward.1} parent=1 // pred_region
      %250 = dma.done [#allocation17], 16
    $region149: #{muse_forward.1} parent=1 // pred_fallthru
      _
    // Predicated region
    $region150: #{muse_forward.1} parent=1 // pred_check
      _
    $region151: #{muse_forward.1} parent=1 // pred_check_branch
      %252 = sbr.rel (0) target = $region153
    $region152: #{muse_forward.1} parent=1 // pred_region
      %254 = dma.done [#allocation17], 16
    $region153: #{muse_forward.1} parent=1 // pred_fallthru
      _
    // Predicated region
    $region154: #{muse_forward.1} parent=1 // pred_check
      _
    $region155: #{muse_forward.1} parent=1 // pred_check_branch
      %256 = sbr.rel (0) target = $region157
    $region156: #{muse_forward.1} parent=1 // pred_region
      %258 = dma.done [#allocation20], 16
    $region157: #{muse_forward.1} parent=1 // pred_fallthru
      _
    %v259 = vld [vmem:[#allocation2] sm:$0xff]
    %v260 = vld [vmem:[#allocation7] sm:$0xff]
    %v261 = vld [vmem:[#allocation7 + $0x8] sm:$0xff]
    %v262 = vld [vmem:[%s4] sm:$0x1]
    %v263 = vld [vmem:[#allocation9] sm:$0x1]
    %v264 = vld [vmem:[%s6] sm:$0xff]
    %v265 = vld [vmem:[%s6 + $0x8] sm:$0xff]
    %v266 = vld [vmem:[%s6 + $0x10] sm:$0xff]
    %v267 = vld [vmem:[%s6 + $0x18] sm:$0xff]
    %v268 = vld [vmem:[%s6 + $0x20] sm:$0xff]
    %v269 = vld [vmem:[%s6 + $0x28] sm:$0xff]
    %v270 = vld [vmem:[%s6 + $0x30] sm:$0xff]
    %v271 = vld [vmem:[%s6 + $0x38] sm:$0xff]
    %v272 = vld [vmem:[%s7] sm:$0x1]
    %v273 = vld [vmem:[%s8] sm:$0x1]
    %vm274 = vcmask 130048
    %v276 = vsel %vm274, %v259, 0
    %278 = vmatpush.msra.mxu0 0.0
    %279 = vmatpush.msra.mxu0 0.0
    %280 = vmatpush.msra.mxu0 0.0
    %281 = vmatpush.msra.mxu0 0.0
    %282 = vmatpush.msra.mxu0 0.0
    %283 = vmatpush.msra.mxu0 0.0
    %284 = vmatpush.msra.mxu0 0.0
    %285 = vmatpush.msra.mxu0 0.0
    %286 = vmatpush.msra.mxu0 0.0
    %287 = vmatpush.msra.mxu0 0.0
    %288 = vmatpush.msra.mxu0 0.0
    %289 = vmatpush.msra.mxu0 0.0
    %290 = vmatpush.msra.mxu0 0.0
    %291 = vmatpush.msra.mxu0 0.0
    %292 = vmatpush.msra.mxu0 %v261
    %293 = vmatpush.msra.mxu0 %v260
    %294 = vmatmul.f32.gmra.mxu0 %v276
    %v295 = vpop.f32.mrf.mxu0
    %v296 = vadd.f32 0.0, %v295
    %297 = vdwg.mxu0
    %vm298 = vcmask 523264
    %v299 = vsel %vm298, %v296, 0.0
    %v300 = vrot.slane %v299, 4
    %v301 = vadd.f32 %v299, %v300
    %v302 = vrot.slane %v301, 2
    %v303 = vadd.f32 %v301, %v302
    %v304 = vrot.slane %v303, 1
    %v305 = vadd.f32 %v303, %v304
    %v306 = vrcp.pop 8.0
    %v307 = vmul.f32 8.0, %v306
    %v308 = vsub.f32 1.0, %v307
    %v309 = vmul.f32 %v306, %v308
    %v310 = vadd.f32 %v306, %v309
    %vm311 = vweird.f32 %v306
    %v312 = vsel %vm311, %v306, %v310
    %v313 = vmul.f32 %v305, %v312
    %v314 = vmul.f32 %v296, %v296
    %v315 = vsel %vm298, %v314, 0.0
    %v316 = vrot.slane %v315, 4
    %v317 = vadd.f32 %v315, %v316
    %v318 = vrot.slane %v317, 2
    %v319 = vadd.f32 %v317, %v318
    %v320 = vrot.slane %v319, 1
    %v321 = vadd.f32 %v319, %v320
    %v322 = vmul.f32 %v321, %v312
    %v323 = vmul.f32 %v313, %v313
    %v324 = vsub.f32 %v322, %v323
    %v325 = vmax.f32 %v324, 0.0
    %v326 = vadd.f32 %v325, 1e-05
    %v327 = vrsqrt.pop %v326
    %v328 = vmul.f32 %v327, %v326
    %v329 = vmul.f32 %v328, %v327
    %v330 = vmul.f32 0.5, %v329
    %v331 = vsub.f32 1.5, %v330
    %v332 = vmul.f32 %v327, %v331
    %vm333 = vweird.f32 %v326
    %vm334 = vweird.f32 %v327
    %vm335 = vmor %vm333, %vm334
    %v336 = vsel %vm335, %v327, %v332
    %v337 = vmul.f32 %v262, %v336
    %v339 = vperm.slane %v337, 0
    %v341 = vmul.f32 %v296, %v339
    %v342 = vmul.f32 %v313, %v337
    %v343 = vsub.f32 %v263, %v342
    %v345 = vperm.slane %v343, 0
    %v347 = vadd.f32 %v341, %v345
    %v348 = vmax.f32 %v347, 0.0
    %v350 = vsel %vm298, %v348, 0
    %352 = vmatpush.msra.mxu0 0.0
    %353 = vmatpush.msra.mxu0 0.0
    %354 = vmatpush.msra.mxu0 0.0
    %355 = vmatpush.msra.mxu0 0.0
    %356 = vmatpush.msra.mxu0 0.0
    %357 = vmatpush.msra.mxu0 0.0
    %358 = vmatpush.msra.mxu0 0.0
    %359 = vmatpush.msra.mxu0 0.0
    %360 = vmatpush.msra.mxu0 %v271
    %361 = vmatpush.msra.mxu0 %v270
    %362 = vmatpush.msra.mxu0 %v269
    %363 = vmatpush.msra.mxu0 %v268
    %364 = vmatpush.msra.mxu0 %v267
    %365 = vmatpush.msra.mxu0 %v266
    %366 = vmatpush.msra.mxu0 %v265
    %367 = vmatpush.msra.mxu0 %v264
    %368 = vmatmul.f32.gmra.mxu0 %v350
    %v369 = vpop.f32.mrf.mxu0
    %v370 = vadd.f32 0.0, %v369
    %371 = vdwg.mxu0
    %v372 = vsel %vm298, %v370, 0.0
    %v373 = vrot.slane %v372, 4
    %v374 = vadd.f32 %v372, %v373
    %v375 = vrot.slane %v374, 2
    %v376 = vadd.f32 %v374, %v375
    %v377 = vrot.slane %v376, 1
    %v378 = vadd.f32 %v376, %v377
    %v379 = vmul.f32 %v378, %v312
    %v380 = vmul.f32 %v370, %v370
    %v381 = vsel %vm298, %v380, 0.0
    %v382 = vrot.slane %v381, 4
    %v383 = vadd.f32 %v381, %v382
    %v384 = vrot.slane %v383, 2
    %v385 = vadd.f32 %v383, %v384
    %v386 = vrot.slane %v385, 1
    %v387 = vadd.f32 %v385, %v386
    %v388 = vmul.f32 %v387, %v312
    %v389 = vmul.f32 %v379, %v379
    %v390 = vsub.f32 %v388, %v389
    %v391 = vmax.f32 %v390, 0.0
    %v392 = vadd.f32 %v391, 1e-05
    %v393 = vrsqrt.pop %v392
    %v394 = vmul.f32 %v393, %v392
    %v395 = vmul.f32 %v394, %v393
    %v396 = vmul.f32 0.5, %v395
    %v397 = vsub.f32 1.5, %v396
    %v398 = vmul.f32 %v393, %v397
    %vm399 = vweird.f32 %v392
    %vm400 = vweird.f32 %v393
    %vm401 = vmor %vm399, %vm400
    %v402 = vsel %vm401, %v393, %v398
    %v403 = vmul.f32 %v272, %v402
    %v405 = vperm.slane %v403, 0
    %v407 = vmul.f32 %v370, %v405
    %v408 = vmul.f32 %v379, %v403
    %v409 = vsub.f32 %v273, %v408
    %v411 = vperm.slane %v409, 0
    %v413 = vadd.f32 %v407, %v411
    %v414 = vld [vmem:[#allocation6] sm:$0xff]
    %v415 = vmul.f32 %v413, 0.5
    %v416 = vmul.f32 %v415, 1.442695
    %v417 = vpow.pop %v416
    %419 = vrot.lane.b32.xlu0 %v417, 96
    %v420 = vpop.permute.xlu0 %419
    %v422 = vmul.f32 %v414, %v420
    %v423 = vadd.f32 %v413, %v422
    %v424 = vld [vmem:[#allocation4] sm:$0xff]
    %v425 = vld [vmem:[#allocation10] sm:$0xff]
    %v426 = vld [vmem:[#allocation10 + $0x8] sm:$0xff]
    %v427 = vld [vmem:[#allocation10 + $0x10] sm:$0xff]
    %v428 = vld [vmem:[#allocation10 + $0x18] sm:$0xff]
    %v429 = vld [vmem:[%s10] sm:$0x1]
    %v430 = vld [vmem:[%s11] sm:$0x1]
    %v431 = vld [vmem:[%s12] sm:$0xff]
    %v432 = vld [vmem:[%s12 + $0x8] sm:$0xff]
    %v433 = vld [vmem:[%s12 + $0x10] sm:$0xff]
    %v434 = vld [vmem:[%s12 + $0x18] sm:$0xff]
    %v435 = vld [vmem:[%s12 + $0x20] sm:$0xff]
    %v436 = vld [vmem:[%s12 + $0x28] sm:$0xff]
    %v437 = vld [vmem:[%s12 + $0x30] sm:$0xff]
    %v438 = vld [vmem:[%s12 + $0x38] sm:$0xff]
    %v439 = vld [vmem:[%s12 + $0x40] sm:$0xff]
    %v440 = vld [vmem:[%s12 + $0x48] sm:$0xff]
    %v441 = vld [vmem:[%s12 + $0x50] sm:$0xff]
    %v442 = vld [vmem:[%s12 + $0x58] sm:$0xff]
    %v443 = vld [vmem:[%s12 + $0x60] sm:$0xff]
    %v444 = vld [vmem:[%s12 + $0x68] sm:$0xff]
    %v445 = vld [vmem:[%s12 + $0x70] sm:$0xff]
    %v446 = vld [vmem:[%s12 + $0x78] sm:$0xff]
    %v447 = vld [vmem:[%s13] sm:$0x1]
    %v448 = vld [vmem:[%s14] sm:$0x1]
    %vm449 = vcmask 261120
    %v451 = vsel %vm449, %v424, 0
    %453 = vmatpush.msra.mxu0 0.0
    %454 = vmatpush.msra.mxu0 0.0
    %455 = vmatpush.msra.mxu0 0.0
    %456 = vmatpush.msra.mxu0 0.0
    %457 = vmatpush.msra.mxu0 0.0
    %458 = vmatpush.msra.mxu0 0.0
    %459 = vmatpush.msra.mxu0 0.0
    %460 = vmatpush.msra.mxu0 0.0
    %461 = vmatpush.msra.mxu0 0.0
    %462 = vmatpush.msra.mxu0 0.0
    %463 = vmatpush.msra.mxu0 0.0
    %464 = vmatpush.msra.mxu0 0.0
    %465 = vmatpush.msra.mxu0 %v428
    %466 = vmatpush.msra.mxu0 %v427
    %467 = vmatpush.msra.mxu0 %v426
    %468 = vmatpush.msra.mxu0 %v425
    %469 = vmatmul.f32.gmra.mxu0 %v451
    %v470 = vpop.f32.mrf.mxu0
    %v471 = vadd.f32 0.0, %v470
    %472 = vdwg.mxu0
    %v473 = vrot.slane %v471, 4
    %v474 = vadd.f32 %v471, %v473
    %v475 = vrot.slane %v474, 2
    %v476 = vadd.f32 %v474, %v475
    %v477 = vrot.slane %v476, 1
    %v478 = vadd.f32 %v476, %v477
    %v479 = vmul.f32 %v478, %v312
    %v480 = vmul.f32 %v471, %v471
    %v481 = vrot.slane %v480, 4
    %v482 = vadd.f32 %v480, %v481
    %v483 = vrot.slane %v482, 2
    %v484 = vadd.f32 %v482, %v483
    %v485 = vrot.slane %v484, 1
    %v486 = vadd.f32 %v484, %v485
    %v487 = vmul.f32 %v486, %v312
    %v488 = vmul.f32 %v479, %v479
    %v489 = vsub.f32 %v487, %v488
    %v490 = vmax.f32 %v489, 0.0
    %v491 = vadd.f32 %v490, 1e-05
    %v492 = vrsqrt.pop %v491
    %v493 = vmul.f32 %v492, %v491
    %v494 = vmul.f32 %v493, %v492
    %v495 = vmul.f32 0.5, %v494
    %v496 = vsub.f32 1.5, %v495
    %v497 = vmul.f32 %v492, %v496
    %vm498 = vweird.f32 %v491
    %vm499 = vweird.f32 %v492
    %vm500 = vmor %vm498, %vm499
    %v501 = vsel %vm500, %v492, %v497
    %v502 = vmul.f32 %v429, %v501
    %v504 = vperm.slane %v502, 0
    %v506 = vmul.f32 %v471, %v504
    %v507 = vmul.f32 %v479, %v502
    %v508 = vsub.f32 %v430, %v507
    %v510 = vperm.slane %v508, 0
    %v512 = vadd.f32 %v506, %v510
    %v513 = vmax.f32 %v512, 0.0
    %514 = vmatpush.msra.mxu0 %v446
    %515 = vmatpush.msra.mxu0 %v445
    %516 = vmatpush.msra.mxu0 %v444
    %517 = vmatpush.msra.mxu0 %v443
    %518 = vmatpush.msra.mxu0 %v442
    %519 = vmatpush.msra.mxu0 %v441
    %520 = vmatpush.msra.mxu0 %v440
    %521 = vmatpush.msra.mxu0 %v439
    %522 = vmatpush.msra.mxu0 %v438
    %523 = vmatpush.msra.mxu0 %v437
    %524 = vmatpush.msra.mxu0 %v436
    %525 = vmatpush.msra.mxu0 %v435
    %526 = vmatpush.msra.mxu0 %v434
    %527 = vmatpush.msra.mxu0 %v433
    %528 = vmatpush.msra.mxu0 %v432
    %529 = vmatpush.msra.mxu0 %v431
    %530 = vmatmul.f32.gmra.mxu0 %v513
    %v531 = vpop.f32.mrf.mxu0
    %v532 = vadd.f32 0.0, %v531
    %533 = vdwg.mxu0
    %v534 = vsel %vm298, %v532, 0.0
    %v535 = vrot.slane %v534, 4
    %v536 = vadd.f32 %v534, %v535
    %v537 = vrot.slane %v536, 2
    %v538 = vadd.f32 %v536, %v537
    %v539 = vrot.slane %v538, 1
    %v540 = vadd.f32 %v538, %v539
    %v541 = vmul.f32 %v540, %v312
    %v542 = vmul.f32 %v532, %v532
    %v543 = vsel %vm298, %v542, 0.0
    %v544 = vrot.slane %v543, 4
    %v545 = vadd.f32 %v543, %v544
    %v546 = vrot.slane %v545, 2
    %v547 = vadd.f32 %v545, %v546
    %v548 = vrot.slane %v547, 1
    %v549 = vadd.f32 %v547, %v548
    %v550 = vmul.f32 %v549, %v312
    %v551 = vmul.f32 %v541, %v541
    %v552 = vsub.f32 %v550, %v551
    %v553 = vmax.f32 %v552, 0.0
    %v554 = vadd.f32 %v553, 1e-05
    %v555 = vrsqrt.pop %v554
    %v556 = vmul.f32 %v555, %v554
    %v557 = vmul.f32 %v556, %v555
    %v558 = vmul.f32 0.5, %v557
    %v559 = vsub.f32 1.5, %v558
    %v560 = vmul.f32 %v555, %v559
    %vm561 = vweird.f32 %v554
    %vm562 = vweird.f32 %v555
    %vm563 = vmor %vm561, %vm562
    %v564 = vsel %vm563, %v555, %v560
    %v565 = vmul.f32 %v447, %v564
    %v567 = vperm.slane %v565, 0
    %v569 = vmul.f32 %v532, %v567
    %v570 = vmul.f32 %v541, %v565
    %v571 = vsub.f32 %v448, %v570
    %v573 = vperm.slane %v571, 0
    %v575 = vadd.f32 %v569, %v573
    %s576 = scalar_lea.vmem [#allocation6], 8
    %v577 = vld [vmem:[%s576] sm:$0xff]
    %v578 = vmul.f32 %v575, 0.5
    %v579 = vmul.f32 %v578, 1.442695
    %v580 = vpow.pop %v579
    %582 = vrot.lane.b32.xlu0 %v580, 96
    %v583 = vpop.permute.xlu0 %582
    %v585 = vmul.f32 %v577, %v583
    %v586 = vadd.f32 %v575, %v585
    %v587 = vld [vmem:[#allocation12] sm:$0xff]
    %v588 = vld [vmem:[#allocation12 + $0x8] sm:$0xff]
    %v589 = vld [vmem:[#allocation12 + $0x10] sm:$0xff]
    %v590 = vld [vmem:[#allocation12 + $0x18] sm:$0xff]
    %v591 = vld [vmem:[#allocation12 + $0x20] sm:$0xff]
    %v592 = vld [vmem:[#allocation12 + $0x28] sm:$0xff]
    %v593 = vld [vmem:[#allocation12 + $0x30] sm:$0xff]
    %v594 = vld [vmem:[#allocation12 + $0x38] sm:$0xff]
    %v595 = vld [vmem:[#allocation12 + $0x40] sm:$0xff]
    %v596 = vld [vmem:[#allocation12 + $0x48] sm:$0xff]
    %v597 = vld [vmem:[#allocation12 + $0x50] sm:$0xff]
    %v598 = vld [vmem:[#allocation12 + $0x58] sm:$0xff]
    %v599 = vld [vmem:[#allocation12 + $0x60] sm:$0xff]
    %v600 = vld [vmem:[#allocation12 + $0x68] sm:$0xff]
    %v601 = vld [vmem:[#allocation12 + $0x70] sm:$0xff]
    %v602 = vld [vmem:[#allocation12 + $0x78] sm:$0xff]
    %v604 = vsel %vm449, %v586, 0
    %606 = vmatpush.msra.mxu0 0.0
    %607 = vmatpush.msra.mxu0 0.0
    %608 = vmatpush.msra.mxu0 0.0
    %609 = vmatpush.msra.mxu0 0.0
    %610 = vmatpush.msra.mxu0 0.0
    %611 = vmatpush.msra.mxu0 0.0
    %612 = vmatpush.msra.mxu0 0.0
    %613 = vmatpush.msra.mxu0 0.0
    %614 = vmatpush.msra.mxu0 0.0
    %615 = vmatpush.msra.mxu0 0.0
    %616 = vmatpush.msra.mxu0 0.0
    %617 = vmatpush.msra.mxu0 0.0
    %618 = vmatpush.msra.mxu0 %v601
    %619 = vmatpush.msra.mxu0 %v599
    %620 = vmatpush.msra.mxu0 %v597
    %621 = vmatpush.msra.mxu0 %v595
    %622 = vmatmul.f32.gmra.mxu0 %v604
    %v623 = vpop.f32.mrf.mxu0
    %v624 = vadd.f32 0.0, %v623
    %625 = vdwg.mxu0
    %626 = vmatpush.msra.mxu0 0.0
    %627 = vmatpush.msra.mxu0 0.0
    %628 = vmatpush.msra.mxu0 0.0
    %629 = vmatpush.msra.mxu0 0.0
    %630 = vmatpush.msra.mxu0 0.0
    %631 = vmatpush.msra.mxu0 0.0
    %632 = vmatpush.msra.mxu0 0.0
    %633 = vmatpush.msra.mxu0 0.0
    %634 = vmatpush.msra.mxu0 0.0
    %635 = vmatpush.msra.mxu0 0.0
    %636 = vmatpush.msra.mxu0 0.0
    %637 = vmatpush.msra.mxu0 0.0
    %638 = vmatpush.msra.mxu0 %v602
    %639 = vmatpush.msra.mxu0 %v600
    %640 = vmatpush.msra.mxu0 %v598
    %641 = vmatpush.msra.mxu0 %v596
    %642 = vmatmul.f32.gmra.mxu0 %v604
    %v643 = vpop.f32.mrf.mxu0
    %v644 = vadd.f32 0.0, %v643
    %645 = vdwg.mxu0
    %v647 = vsel %vm449, %v423, 0
    %649 = vmatpush.msra.mxu0 0.0
    %650 = vmatpush.msra.mxu0 0.0
    %651 = vmatpush.msra.mxu0 0.0
    %652 = vmatpush.msra.mxu0 0.0
    %653 = vmatpush.msra.mxu0 0.0
    %654 = vmatpush.msra.mxu0 0.0
    %655 = vmatpush.msra.mxu0 0.0
    %656 = vmatpush.msra.mxu0 0.0
    %657 = vmatpush.msra.mxu0 0.0
    %658 = vmatpush.msra.mxu0 0.0
    %659 = vmatpush.msra.mxu0 0.0
    %660 = vmatpush.msra.mxu0 0.0
    %661 = vmatpush.msra.mxu0 %v593
    %662 = vmatpush.msra.mxu0 %v591
    %663 = vmatpush.msra.mxu0 %v589
    %664 = vmatpush.msra.mxu0 %v587
    %665 = vmatmul.f32.gmra.mxu0 %v647
    %v666 = vpop.f32.mrf.mxu0
    %v667 = vadd.f32 %v624, %v666
    %668 = vdwg.mxu0
    %669 = vmatpush.msra.mxu0 0.0
    %670 = vmatpush.msra.mxu0 0.0
    %671 = vmatpush.msra.mxu0 0.0
    %672 = vmatpush.msra.mxu0 0.0
    %673 = vmatpush.msra.mxu0 0.0
    %674 = vmatpush.msra.mxu0 0.0
    %675 = vmatpush.msra.mxu0 0.0
    %676 = vmatpush.msra.mxu0 0.0
    %677 = vmatpush.msra.mxu0 0.0
    %678 = vmatpush.msra.mxu0 0.0
    %679 = vmatpush.msra.mxu0 0.0
    %680 = vmatpush.msra.mxu0 0.0
    %681 = vmatpush.msra.mxu0 %v594
    %682 = vmatpush.msra.mxu0 %v592
    %683 = vmatpush.msra.mxu0 %v590
    %684 = vmatpush.msra.mxu0 %v588
    %685 = vmatmul.f32.gmra.mxu0 %v647
    %v686 = vpop.f32.mrf.mxu0
    %v687 = vadd.f32 %v644, %v686
    %688 = vdwg.mxu0
    %v689 = vld [vmem:[%s16] sm:$0x3]
    %v690 = vld [vmem:[%s17] sm:$0x3]
    %v691 = vrot.slane %v667, 4
    %v692 = vadd.f32 %v667, %v691
    %v693 = vrot.slane %v692, 2
    %v694 = vadd.f32 %v692, %v693
    %v695 = vrot.slane %v694, 1
    %v696 = vadd.f32 %v694, %v695
    %v697 = vrot.slane %v687, 4
    %v698 = vadd.f32 %v687, %v697
    %v699 = vrot.slane %v698, 2
    %v700 = vadd.f32 %v698, %v699
    %v701 = vrot.slane %v700, 1
    %v702 = vadd.f32 %v700, %v701
    %v703 = vmul.f32 %v696, %v312
    %v704 = vmul.f32 %v702, %v312
    %v705 = vmul.f32 %v667, %v667
    %v706 = vmul.f32 %v687, %v687
    %v707 = vrot.slane %v705, 4
    %v708 = vadd.f32 %v705, %v707
    %v709 = vrot.slane %v708, 2
    %v710 = vadd.f32 %v708, %v709
    %v711 = vrot.slane %v710, 1
    %v712 = vadd.f32 %v710, %v711
    %v713 = vrot.slane %v706, 4
    %v714 = vadd.f32 %v706, %v713
    %v715 = vrot.slane %v714, 2
    %v716 = vadd.f32 %v714, %v715
    %v717 = vrot.slane %v716, 1
    %v718 = vadd.f32 %v716, %v717
    %v719 = vmul.f32 %v712, %v312
    %v720 = vmul.f32 %v718, %v312
    %v721 = vmul.f32 %v703, %v703
    %v722 = vmul.f32 %v704, %v704
    %v723 = vsub.f32 %v719, %v721
    %v724 = vsub.f32 %v720, %v722
    %v725 = vmax.f32 %v723, 0.0
    %v726 = vmax.f32 %v724, 0.0
    %v727 = vadd.f32 %v725, 1e-05
    %v728 = vadd.f32 %v726, 1e-05
    %v729 = vrsqrt.pop %v727
    %v730 = vmul.f32 %v729, %v727
    %v731 = vmul.f32 %v730, %v729
    %v732 = vmul.f32 0.5, %v731
    %v733 = vsub.f32 1.5, %v732
    %v734 = vmul.f32 %v729, %v733
    %vm735 = vweird.f32 %v727
    %vm736 = vweird.f32 %v729
    %vm737 = vmor %vm735, %vm736
    %v738 = vsel %vm737, %v729, %v734
    %v739 = vrsqrt.pop %v728
    %v740 = vmul.f32 %v739, %v728
    %v741 = vmul.f32 %v740, %v739
    %v742 = vmul.f32 0.5, %v741
    %v743 = vsub.f32 1.5, %v742
    %v744 = vmul.f32 %v739, %v743
    %vm745 = vweird.f32 %v728
    %vm746 = vweird.f32 %v739
    %vm747 = vmor %vm745, %vm746
    %v748 = vsel %vm747, %v739, %v744
    %v751 = vrot.slane %v748, 7
    %vm752 = vcmask 1040384
    %v753 = vsel %vm752, %v738, %v751
    %v755 = vmul.f32 %v689, %v753
    %v757 = vperm.slane %v755, 0
    %v758 = vperm.slane %v755, 1
    %v761 = vmul.f32 %v667, %v757
    %v762 = vmul.f32 %v687, %v758
    %v763 = vmul.f32 %v703, %v757
    %v764 = vmul.f32 %v704, %v758
    %v767 = vrot.slane %v764, 7
    %v768 = vsel %vm752, %v763, %v767
    %v770 = vsub.f32 %v690, %v768
    %v772 = vperm.slane %v770, 0
    %v773 = vperm.slane %v770, 1
    %v776 = vadd.f32 %v761, %v772
    %v777 = vadd.f32 %v762, %v773
    %v778 = vmax.f32 %v776, 0.0
    %v779 = vmax.f32 %v777, 0.0
    %v780 = vld [vmem:[%s18] sm:$0xff]
    %v781 = vld [vmem:[%s18 + $0x8] sm:$0xff]
    %v782 = vld [vmem:[%s18 + $0x10] sm:$0xff]
    %v783 = vld [vmem:[%s18 + $0x18] sm:$0xff]
    %v784 = vld [vmem:[%s18 + $0x20] sm:$0xff]
    %v785 = vld [vmem:[%s18 + $0x28] sm:$0xff]
    %v786 = vld [vmem:[%s18 + $0x30] sm:$0xff]
    %v787 = vld [vmem:[%s18 + $0x38] sm:$0xff]
    %v788 = vld [vmem:[%s18 + $0x40] sm:$0xff]
    %v789 = vld [vmem:[%s18 + $0x48] sm:$0xff]
    %v790 = vld [vmem:[%s18 + $0x50] sm:$0xff]
    %v791 = vld [vmem:[%s18 + $0x58] sm:$0xff]
    %v792 = vld [vmem:[%s18 + $0x60] sm:$0xff]
    %v793 = vld [vmem:[%s18 + $0x68] sm:$0xff]
    %v794 = vld [vmem:[%s18 + $0x70] sm:$0xff]
    %v795 = vld [vmem:[%s18 + $0x78] sm:$0xff]
    %v796 = vld [vmem:[%s18 + $0x80] sm:$0xff]
    %v797 = vld [vmem:[%s18 + $0x88] sm:$0xff]
    %v798 = vld [vmem:[%s18 + $0x90] sm:$0xff]
    %v799 = vld [vmem:[%s18 + $0x98] sm:$0xff]
    %v800 = vld [vmem:[%s18 + $0xa0] sm:$0xff]
    %v801 = vld [vmem:[%s18 + $0xa8] sm:$0xff]
    %v802 = vld [vmem:[%s18 + $0xb0] sm:$0xff]
    %v803 = vld [vmem:[%s18 + $0xb8] sm:$0xff]
    %v804 = vld [vmem:[%s18 + $0xc0] sm:$0xff]
    %v805 = vld [vmem:[%s18 + $0xc8] sm:$0xff]
    %v806 = vld [vmem:[%s18 + $0xd0] sm:$0xff]
    %v807 = vld [vmem:[%s18 + $0xd8] sm:$0xff]
    %v808 = vld [vmem:[%s18 + $0xe0] sm:$0xff]
    %v809 = vld [vmem:[%s18 + $0xe8] sm:$0xff]
    %v810 = vld [vmem:[%s18 + $0xf0] sm:$0xff]
    %v811 = vld [vmem:[%s18 + $0xf8] sm:$0xff]
    %812 = vmatpush.msra.mxu0 %v795
    %813 = vmatpush.msra.mxu0 %v794
    %814 = vmatpush.msra.mxu0 %v793
    %815 = vmatpush.msra.mxu0 %v792
    %816 = vmatpush.msra.mxu0 %v791
    %817 = vmatpush.msra.mxu0 %v790
    %818 = vmatpush.msra.mxu0 %v789
    %819 = vmatpush.msra.mxu0 %v788
    %820 = vmatpush.msra.mxu0 %v787
    %821 = vmatpush.msra.mxu0 %v786
    %822 = vmatpush.msra.mxu0 %v785
    %823 = vmatpush.msra.mxu0 %v784
    %824 = vmatpush.msra.mxu0 %v783
    %825 = vmatpush.msra.mxu0 %v782
    %826 = vmatpush.msra.mxu0 %v781
    %827 = vmatpush.msra.mxu0 %v780
    %828 = vmatmul.f32.gmra.mxu0 %v778
    %v829 = vpop.f32.mrf.mxu0
    %v830 = vadd.f32 0.0, %v829
    %831 = vdwg.mxu0
    %832 = vmatpush.msra.mxu0 %v811
    %833 = vmatpush.msra.mxu0 %v810
    %834 = vmatpush.msra.mxu0 %v809
    %835 = vmatpush.msra.mxu0 %v808
    %836 = vmatpush.msra.mxu0 %v807
    %837 = vmatpush.msra.mxu0 %v806
    %838 = vmatpush.msra.mxu0 %v805
    %839 = vmatpush.msra.mxu0 %v804
    %840 = vmatpush.msra.mxu0 %v803
    %841 = vmatpush.msra.mxu0 %v802
    %842 = vmatpush.msra.mxu0 %v801
    %843 = vmatpush.msra.mxu0 %v800
    %844 = vmatpush.msra.mxu0 %v799
    %845 = vmatpush.msra.mxu0 %v798
    %846 = vmatpush.msra.mxu0 %v797
    %847 = vmatpush.msra.mxu0 %v796
    %848 = vmatmul.f32.gmra.mxu0 %v779
    %v849 = vpop.f32.mrf.mxu0
    %v850 = vadd.f32 %v830, %v849
    %851 = vdwg.mxu0
    %v852 = vld [vmem:[%s19] sm:$0x1]
    %v853 = vld [vmem:[%s20] sm:$0x1]
    %v854 = vrot.slane %v850, 4
    %v855 = vadd.f32 %v850, %v854
    %v856 = vrot.slane %v855, 2
    %v857 = vadd.f32 %v855, %v856
    %v858 = vrot.slane %v857, 1
    %v859 = vadd.f32 %v857, %v858
    %v860 = vmul.f32 %v859, %v312
    %v861 = vmul.f32 %v850, %v850
    %v862 = vrot.slane %v861, 4
    %v863 = vadd.f32 %v861, %v862
    %v864 = vrot.slane %v863, 2
    %v865 = vadd.f32 %v863, %v864
    %v866 = vrot.slane %v865, 1
    %v867 = vadd.f32 %v865, %v866
    %v868 = vmul.f32 %v867, %v312
    %v869 = vmul.f32 %v860, %v860
    %v870 = vsub.f32 %v868, %v869
    %v871 = vmax.f32 %v870, 0.0
    %v872 = vadd.f32 %v871, 1e-05
    %v873 = vrsqrt.pop %v872
    %v874 = vmul.f32 %v873, %v872
    %v875 = vmul.f32 %v874, %v873
    %v876 = vmul.f32 0.5, %v875
    %v877 = vsub.f32 1.5, %v876
    %v878 = vmul.f32 %v873, %v877
    %vm879 = vweird.f32 %v872
    %vm880 = vweird.f32 %v873
    %vm881 = vmor %vm879, %vm880
    %v882 = vsel %vm881, %v873, %v878
    %v883 = vmul.f32 %v852, %v882
    %v885 = vperm.slane %v883, 0
    %v887 = vmul.f32 %v850, %v885
    %v888 = vmul.f32 %v860, %v883
    %v889 = vsub.f32 %v853, %v888
    %v891 = vperm.slane %v889, 0
    %v893 = vadd.f32 %v887, %v891
    %v894 = vmul.f32 %v893, 1.442695
    %v895 = vpow.pop %v894
    %v896 = vadd.f32 %v895, 1e-08
    %v897 = vrcp.pop %v896
    %v898 = vmul.f32 %v896, %v897
    %v899 = vsub.f32 1.0, %v898
    %v900 = vmul.f32 %v897, %v899
    %v901 = vadd.f32 %v897, %v900
    %vm902 = vweird.f32 %v896
    %vm903 = vweird.f32 %v897
    %vm904 = vmor %vm902, %vm903
    %v905 = vsel %vm904, %v897, %v901
    %v906 = vand.u32 2147483647, %v896
    %vm907 = vcmp.eq.f32.partialorder %v906, 8.507059e+37
    %v908 = vand.u32 %v896, 2147483648
    %v909 = vor.u32 1.1754944e-38, %v908
    %v910 = vsel %vm907, %v909, %v905
    %v911 = vmul.f32 1.0, %v910
    %v912 = vadd.f32 %v911, 1.0
    %914 = vrot.lane.b32.xlu0 %v911, 96
    %v915 = vpop.permute.xlu0 %914
    %v917 = vmul.f32 %v893, %v915
    %v918 = vadd.f32 %v917, 0.0
    %919 = vrot.lane.b32.xlu0 %v911, 64
    %v920 = vpop.permute.xlu0 %919
    %v922 = vadd.f32 %v912, %v920
    %924 = vrot.lane.b32.xlu0 %v917, 64
    %v925 = vpop.permute.xlu0 %924
    %v927 = vadd.f32 %v918, %v925
    %929 = vrot.lane.b32.xlu0 %v922, 96
    %v930 = vpop.permute.xlu0 %929
    %v932 = vrcp.pop %v930
    %v933 = vmul.f32 %v930, %v932
    %v934 = vsub.f32 1.0, %v933
    %v935 = vmul.f32 %v932, %v934
    %v936 = vadd.f32 %v932, %v935
    %vm937 = vweird.f32 %v930
    %vm938 = vweird.f32 %v932
    %vm939 = vmor %vm937, %vm938
    %v940 = vsel %vm939, %v932, %v936
    %v941 = vand.u32 2147483647, %v930
    %vm942 = vcmp.eq.f32.partialorder %v941, 8.507059e+37
    %v943 = vand.u32 %v930, 2147483648
    %v944 = vor.u32 1.1754944e-38, %v943
    %v945 = vsel %vm942, %v944, %v940
    %v946 = vmul.f32 %v927, %v945
    %s947 = scalar_lea.vmem [#allocation6], 16
    %v948 = vld [vmem:[%s947] sm:$0xff]
    %v949 = vrsqrt.pop %v922
    %v950 = vmul.f32 %v949, %v922
    %v951 = vmul.f32 %v950, %v949
    %v952 = vmul.f32 0.5, %v951
    %v953 = vsub.f32 1.5, %v952
    %v954 = vmul.f32 %v949, %v953
    %vm955 = vweird.f32 %v922
    %vm956 = vweird.f32 %v949
    %vm957 = vmor %vm955, %vm956
    %v958 = vsel %vm957, %v949, %v954
    %960 = vrot.lane.b32.xlu0 %v958, 96
    %v961 = vpop.permute.xlu0 %960
    %v963 = vmul.f32 %v948, %v961
    %v964 = vadd.f32 %v946, %v963
    %v965 = vld [vmem:[#allocation13] sm:$0xff]
    %v966 = vld [vmem:[#allocation13 + $0x8] sm:$0xff]
    %v967 = vld [vmem:[#allocation13 + $0x10] sm:$0xff]
    %v968 = vld [vmem:[#allocation13 + $0x18] sm:$0xff]
    %v969 = vld [vmem:[#allocation15] sm:$0x1]
    %v970 = vld [vmem:[#allocation16] sm:$0x1]
    %v971 = vld [vmem:[%s24] sm:$0xff]
    %v972 = vld [vmem:[%s24 + $0x8] sm:$0xff]
    %v973 = vld [vmem:[%s24 + $0x10] sm:$0xff]
    %v974 = vld [vmem:[%s24 + $0x18] sm:$0xff]
    %v975 = vld [vmem:[%s24 + $0x20] sm:$0xff]
    %v976 = vld [vmem:[%s24 + $0x28] sm:$0xff]
    %v977 = vld [vmem:[%s24 + $0x30] sm:$0xff]
    %v978 = vld [vmem:[%s24 + $0x38] sm:$0xff]
    %v979 = vld [vmem:[%s24 + $0x40] sm:$0xff]
    %v980 = vld [vmem:[%s24 + $0x48] sm:$0xff]
    %v981 = vld [vmem:[%s24 + $0x50] sm:$0xff]
    %v982 = vld [vmem:[%s24 + $0x58] sm:$0xff]
    %v983 = vld [vmem:[%s24 + $0x60] sm:$0xff]
    %v984 = vld [vmem:[%s24 + $0x68] sm:$0xff]
    %v985 = vld [vmem:[%s24 + $0x70] sm:$0xff]
    %v986 = vld [vmem:[%s24 + $0x78] sm:$0xff]
    %v987 = vld [vmem:[#allocation18] sm:$0x1]
    %v988 = vld [vmem:[#allocation19] sm:$0x1]
    %v990 = vsel %vm449, %v964, 0
    %992 = vmatpush.msra.mxu0 0.0
    %993 = vmatpush.msra.mxu0 0.0
    %994 = vmatpush.msra.mxu0 0.0
    %995 = vmatpush.msra.mxu0 0.0
    %996 = vmatpush.msra.mxu0 0.0
    %997 = vmatpush.msra.mxu0 0.0
    %998 = vmatpush.msra.mxu0 0.0
    %999 = vmatpush.msra.mxu0 0.0
    %1000 = vmatpush.msra.mxu0 0.0
    %1001 = vmatpush.msra.mxu0 0.0
    %1002 = vmatpush.msra.mxu0 0.0
    %1003 = vmatpush.msra.mxu0 0.0
    %1004 = vmatpush.msra.mxu0 %v968
    %1005 = vmatpush.msra.mxu0 %v967
    %1006 = vmatpush.msra.mxu0 %v966
    %1007 = vmatpush.msra.mxu0 %v965
    %1008 = vmatmul.f32.gmra.mxu0 %v990
    %v1009 = vpop.f32.mrf.mxu0
    %v1010 = vadd.f32 0.0, %v1009
    %1011 = vdwg.mxu0
    %v1012 = vrot.slane %v1010, 4
    %v1013 = vadd.f32 %v1010, %v1012
    %v1014 = vrot.slane %v1013, 2
    %v1015 = vadd.f32 %v1013, %v1014
    %v1016 = vrot.slane %v1015, 1
    %v1017 = vadd.f32 %v1015, %v1016
    %v1018 = vmul.f32 %v1017, %v312
    %v1019 = vmul.f32 %v1010, %v1010
    %v1020 = vrot.slane %v1019, 4
    %v1021 = vadd.f32 %v1019, %v1020
    %v1022 = vrot.slane %v1021, 2
    %v1023 = vadd.f32 %v1021, %v1022
    %v1024 = vrot.slane %v1023, 1
    %v1025 = vadd.f32 %v1023, %v1024
    %v1026 = vmul.f32 %v1025, %v312
    %v1027 = vmul.f32 %v1018, %v1018
    %v1028 = vsub.f32 %v1026, %v1027
    %v1029 = vmax.f32 %v1028, 0.0
    %v1030 = vadd.f32 %v1029, 1e-05
    %v1031 = vrsqrt.pop %v1030
    %v1032 = vmul.f32 %v1031, %v1030
    %v1033 = vmul.f32 %v1032, %v1031
    %v1034 = vmul.f32 0.5, %v1033
    %v1035 = vsub.f32 1.5, %v1034
    %v1036 = vmul.f32 %v1031, %v1035
    %vm1037 = vweird.f32 %v1030
    %vm1038 = vweird.f32 %v1031
    %vm1039 = vmor %vm1037, %vm1038
    %v1040 = vsel %vm1039, %v1031, %v1036
    %v1041 = vmul.f32 %v969, %v1040
    %v1043 = vperm.slane %v1041, 0
    %v1045 = vmul.f32 %v1010, %v1043
    %v1046 = vmul.f32 %v1018, %v1041
    %v1047 = vsub.f32 %v970, %v1046
    %v1049 = vperm.slane %v1047, 0
    %v1051 = vadd.f32 %v1045, %v1049
    %v1052 = vmax.f32 %v1051, 0.0
    %1053 = vmatpush.msra.mxu0 %v986
    %1054 = vmatpush.msra.mxu0 %v985
    %1055 = vmatpush.msra.mxu0 %v984
    %1056 = vmatpush.msra.mxu0 %v983
    %1057 = vmatpush.msra.mxu0 %v982
    %1058 = vmatpush.msra.mxu0 %v981
    %1059 = vmatpush.msra.mxu0 %v980
    %1060 = vmatpush.msra.mxu0 %v979
    %1061 = vmatpush.msra.mxu0 %v978
    %1062 = vmatpush.msra.mxu0 %v977
    %1063 = vmatpush.msra.mxu0 %v976
    %1064 = vmatpush.msra.mxu0 %v975
    %1065 = vmatpush.msra.mxu0 %v974
    %1066 = vmatpush.msra.mxu0 %v973
    %1067 = vmatpush.msra.mxu0 %v972
    %1068 = vmatpush.msra.mxu0 %v971
    %1069 = vmatmul.f32.gmra.mxu0 %v1052
    %v1070 = vpop.f32.mrf.mxu0
    %v1071 = vadd.f32 0.0, %v1070
    %1072 = vdwg.mxu0
    %v1073 = vsel %vm298, %v1071, 0.0
    %v1074 = vrot.slane %v1073, 4
    %v1075 = vadd.f32 %v1073, %v1074
    %v1076 = vrot.slane %v1075, 2
    %v1077 = vadd.f32 %v1075, %v1076
    %v1078 = vrot.slane %v1077, 1
    %v1079 = vadd.f32 %v1077, %v1078
    %v1080 = vmul.f32 %v1079, %v312
    %v1081 = vmul.f32 %v1071, %v1071
    %v1082 = vsel %vm298, %v1081, 0.0
    %v1083 = vrot.slane %v1082, 4
    %v1084 = vadd.f32 %v1082, %v1083
    %v1085 = vrot.slane %v1084, 2
    %v1086 = vadd.f32 %v1084, %v1085
    %v1087 = vrot.slane %v1086, 1
    %v1088 = vadd.f32 %v1086, %v1087
    %v1089 = vmul.f32 %v1088, %v312
    %v1090 = vmul.f32 %v1080, %v1080
    %v1091 = vsub.f32 %v1089, %v1090
    %v1092 = vmax.f32 %v1091, 0.0
    %v1093 = vadd.f32 %v1092, 1e-05
    %v1094 = vrsqrt.pop %v1093
    %v1095 = vmul.f32 %v1094, %v1093
    %v1096 = vmul.f32 %v1095, %v1094
    %v1097 = vmul.f32 0.5, %v1096
    %v1098 = vsub.f32 1.5, %v1097
    %v1099 = vmul.f32 %v1094, %v1098
    %vm1100 = vweird.f32 %v1093
    %vm1101 = vweird.f32 %v1094
    %vm1102 = vmor %vm1100, %vm1101
    %v1103 = vsel %vm1102, %v1094, %v1099
    %v1104 = vmul.f32 %v987, %v1103
    %v1106 = vperm.slane %v1104, 0
    %v1108 = vmul.f32 %v1071, %v1106
    %v1109 = vmul.f32 %v1080, %v1104
    %v1110 = vsub.f32 %v988, %v1109
    %v1112 = vperm.slane %v1110, 0
    %v1114 = vadd.f32 %v1108, %v1112
    %1115 = vst.msk [vmem:[%s27] sm:$0xff] %vm298, %v1114
    // Predicated region
    $region158: #{muse_forward.1} parent=1 // pred_check
      _
    $region159: #{muse_forward.1} parent=1 // pred_check_branch
      %1117 = sbr.rel (0) target = $region161
    $region160: #{muse_forward.1} parent=1 // pred_region
      _
    $region161: #{muse_forward.1} parent=1 // pred_fallthru
      _
    // Predicated region
    $region162: #{muse_forward.1} parent=1 // pred_check
      _
    $region163: #{muse_forward.1} parent=1 // pred_check_branch
      %1119 = sbr.rel (0) target = $region165
    $region164: #{muse_forward.1} parent=1 // pred_region
      _
    $region165: #{muse_forward.1} parent=1 // pred_fallthru
      _
    %1120 = vsyncpa [#allocation3], 1
    %1121 = vsyncpa [#allocation5], 1
    %1122 = vsyncpa [#allocation8], 1
    %1123 = vsyncpa [#allocation11], 1
    %1124 = vsyncpa [#allocation14], 1
    %1125 = vsyncpa [#allocation17], 1
    %1126 = vsyncpa [#allocation20], 1

</llo_original>
